<compile_context>
chip_gen: v7x
topology: tpu7x:2x2x1
jax: 0.10.0
libtpu: 0.0.40
codegen_flags: <defaults>
</compile_context>

<pallas_src>
import functools
import math

import jax
import jax.numpy as jnp
import numpy as np
from jax.experimental import pallas as pl
from jax.experimental.pallas import tpu as pltpu

# ---------------- configuration (matches Generator.__init__ at small size) -----
NGF = 8           # ngf
NDEP = 2          # nDep
NPERIODIC = 4     # nPeriodic (multiple of 4, see initWave)
NGL = 4           # nGL   (global latent channels fed to wavenet)
NC = 3            # nc    (output image channels)
KPERIODIC = 8     # Kperiodic
NZ = 8            # nz == in-channels of main[0]
KEEP = NZ - NPERIODIC          # noise channels kept verbatim by setWave
N_NOISE_CH = NZ + NPERIODIC    # channels of the raw noise input
BATCH = 2
SPATIAL = 8       # input spatial size; output is SPATIAL * 2**NDEP


# ------------------------------ fused Pallas kernel -----------------------------
def _generator_kernel(xk_ref, xg_ref, pe_ref, po_ref,
                      w1_ref, b1_ref, w2e_ref, ce_ref, w2o_ref, co_ref,
                      *rest, n_layers, h0, acts):
    """Fused setWave + [Upsample2x -> Conv5x5 -> affine -> act] * n_layers.

    rest = [m_0, s_0, t_0, ..., m_{L-1}, s_{L-1}, t_{L-1}, o_ref, up_0, ..., up_{L-1}]
      m_i      : (5, L_in_i, L_out_i) banded conv matrices (h-upsample/pad folded in)
      s_i, t_i : (1, L_out_i) fused conv-bias + eval-BN affine
      up_i     : VMEM scratch (2*h_i + 4, L_in_i): row-duplicated, row-padded input
    Layout everywhere: rows = image rows, lanes = width * channels ("L1").
    """
    layer_refs = rest[:3 * n_layers]
    o_ref = rest[3 * n_layers]
    ups = rest[3 * n_layers + 1:]

    # ---------------- setWave (eval mode: random phase offset == 0) ------------
    xg = xg_ref[...].reshape(h0, -1)                       # (h0, W0*nGL)
    hid = jnp.dot(xg, w1_ref[...], preferred_element_type=jnp.float32) + b1_ref[...]
    hid = jnp.maximum(hid, 0.0)                            # wavenet hidden, (h0, W0*K)
    wv_e = jnp.dot(hid, w2e_ref[...], preferred_element_type=jnp.float32) + ce_ref[...]
    wv_o = jnp.dot(hid, w2o_ref[...], preferred_element_type=jnp.float32) + co_ref[...]
    pe = pe_ref[...].reshape(h0, -1)                       # periodic noise, even chans
    po = po_ref[...].reshape(h0, -1)                       # periodic noise, odd chans
    wave = jnp.sin(wv_e * pe + wv_o * po)                  # (h0, W0*nP)

    xkeep = xk_ref[...].reshape(h0, -1)                    # kept noise channels
    x = jnp.concatenate([xkeep, wave], axis=1)             # (h0, L_in0) block layout

    # ---------------- conv stack -----------------------------------------------
    h = h0
    for i in range(n_layers):
        m_ref = layer_refs[3 * i]
        s_ref = layer_refs[3 * i + 1]
        t_ref = layer_refs[3 * i + 2]
        up = ups[i]
        l_out = m_ref.shape[2]

        # nearest-2x vertical upsample + 2-row zero pad, written into VMEM scratch
        up[...] = jnp.zeros_like(up)
        for k in range(h):
            row = x[k:k + 1, :]
            up[pl.ds(2 + 2 * k, 1), :] = row
            up[pl.ds(3 + 2 * k, 1), :] = row

        # 5x5 conv == 5 banded matmuls (K = L_in, lane-dense); horizontal
        # upsample / pad / dx taps are folded into m_ref on the host.
        acc = jnp.zeros((2 * h, l_out), jnp.float32)
        for dy in range(5):
            acc = acc + jnp.dot(up[pl.ds(dy, 2 * h), :], m_ref[dy],
                                preferred_element_type=jnp.float32)

        acc = acc * s_ref[...] + t_ref[...]                # conv bias + eval-BN affine
        x = jnp.maximum(acc, 0.0) if acts[i] == "relu" else jnp.tanh(acc)
        h = 2 * h

    o_ref[...] = x.reshape(1, h, x.shape[1])


# ------------------------------ pallas_call wrapper -----------------------------
def fused_generator_call(p, x_keep, x_g, per_e, per_o):
    n, h0, _ = x_keep.shape
    n_layers = len(p["m"])
    h_out = h0 * (2 ** n_layers)
    l_out = p["m"][-1].shape[2]
    acts = tuple("tanh" if i == n_layers - 1 else "relu" for i in range(n_layers))

    kern = functools.partial(_generator_kernel, n_layers=n_layers, h0=h0, acts=acts)

    def per_image_spec(a):                     # batch-split (parallel grid axis)
        return pl.BlockSpec((1,) + tuple(a.shape[1:]), lambda b: (b, 0, 0))

    def shared_spec(a):                        # weights: same full block every step
        nd = a.ndim
        return pl.BlockSpec(tuple(a.shape), lambda b, _nd=nd: (0,) * _nd)

    weights = [p["w1bd"], p["b1t"], p["w2e"], p["ce"], p["w2o"], p["co"]]
    for i in range(n_layers):
        weights += [p["m"][i], p["s"][i], p["t"][i]]

    scratch = []
    h = h0
    for i in range(n_layers):
        scratch.append(pltpu.VMEM((2 * h + 4, p["m"][i].shape[1]), jnp.float32))
        h *= 2

    return pl.pallas_call(
        kern,
        out_shape=jax.ShapeDtypeStruct((n, h_out, l_out), jnp.float32),
        grid=(n,),
        in_specs=([per_image_spec(a) for a in (x_keep, x_g, per_e, per_o)]
                  + [shared_spec(w) for w in weights]),
        out_specs=pl.BlockSpec((1, h_out, l_out), lambda b: (b, 0, 0)),
        scratch_shapes=scratch,
        compiler_params=pltpu.CompilerParams(dimension_semantics=("parallel",)),
    )(x_keep, x_g, per_e, per_o, *weights)


# ------------------------------ parameters --------------------------------------
def init_params(key):
    assert NPERIODIC % 4 == 0
    keys = jax.random.split(key, 5 + 2 * NDEP)

    # ---- raw module parameters (PyTorch-equivalent, random init) ---------------
    buf = []
    for i in range(NPERIODIC // 4):
        v = 0.5 + i / float(NPERIODIC / 2)
        buf += [0, v, v, 0]
        buf += [0, -v, -v, 0]
    waver = jnp.array(buf, jnp.float32) * math.pi
    waver = waver + 0.1 * jax.random.normal(keys[0], (2 * NPERIODIC,), jnp.float32)

    w1 = 0.2 * jax.random.normal(keys[1], (NGL, KPERIODIC), jnp.float32)       # (Cin,K)
    b1 = 0.1 * jax.random.normal(keys[2], (KPERIODIC,), jnp.float32)
    w2 = 0.2 * jax.random.normal(keys[3], (KPERIODIC, 2 * NPERIODIC), jnp.float32)
    b2 = 0.1 * jax.random.normal(keys[4], (2 * NPERIODIC,), jnp.float32)

    convs = []
    of = NZ
    for i in range(NDEP):
        nf = NC if i == NDEP - 1 else NGF * 2 ** (NDEP - 2 - i)
        wc = 0.1 * jax.random.normal(keys[5 + 2 * i], (5, 5, of, nf), jnp.float32)  # HWIO
        bc = 0.05 * jax.random.normal(keys[6 + 2 * i], (nf,), jnp.float32)
        convs.append((wc, bc))
        of = nf

    raw = dict(waver=waver, w1=w1, b1=b1, w2=w2, b2=b2, convs=convs)

    # ---- host-precomputed kernel operands (L1 layout: lane = x*C + c) ----------
    w0, nP, k_p, ngl, keep = SPATIAL, NPERIODIC, KPERIODIC, NGL, KEEP
    w1n, b1n = np.asarray(w1), np.asarray(b1)
    w2n, b2n = np.asarray(w2), np.asarray(b2)
    wvn = np.asarray(waver)

    # block-diagonal matrices for the per-pixel 1x1 wavenet convs
    w1bd = np.zeros((w0 * ngl, w0 * k_p), np.float32)
    w2e = np.zeros((w0 * k_p, w0 * nP), np.float32)
    w2o = np.zeros((w0 * k_p, w0 * nP), np.float32)
    for xi in range(w0):
        w1bd[xi * ngl:(xi + 1) * ngl, xi * k_p:(xi + 1) * k_p] = w1n
        w2e[xi * k_p:(xi + 1) * k_p, xi * nP:(xi + 1) * nP] = w2n[:, 0::2]
        w2o[xi * k_p:(xi + 1) * k_p, xi * nP:(xi + 1) * nP] = w2n[:, 1::2]
    b1t = np.tile(b1n, w0)[None, :]
    ce = np.tile(b2n[0::2] + wvn[0::2], w0)[None, :]       # wavenet bias + waver (even)
    co = np.tile(b2n[1::2] + wvn[1::2], w0)[None, :]       # (odd)

    # banded conv matrices: nearest-2x horizontal upsample + pad=2 + the 5 dx taps
    # folded into a (L_in, 2*w_in*Cout) matrix per kernel row dy.
    ms, ss, ts = [], [], []
    w_in = w0
    for i, (wc, bc) in enumerate(convs):
        wn, bn = np.asarray(wc), np.asarray(bc)
        cin, cout = wn.shape[2], wn.shape[3]
        if i == 0:
            # layer-0 input lanes: [keep block (w0*keep) | wave block (w0*nP)]
            l_in = w0 * (keep + nP)

            def lane_of(xi, ci, _w=w_in):
                if ci < keep:
                    return xi * keep + ci
                return _w * keep + xi * nP + (ci - keep)
        else:
            l_in = w_in * cin

            def lane_of(xi, ci, _cin=cin):
                return xi * _cin + ci

        l_out = 2 * w_in * cout
        m = np.zeros((5, l_in, l_out), np.float32)
        for dy in range(5):
            for xo in range(2 * w_in):
                for dx in range(5):
                    xi = (xo + dx - 2) // 2          # nearest-upsample source column
                    if 0 <= xi < w_in:
                        for ci in range(cin):
                            m[dy, lane_of(xi, ci),
                              xo * cout:(xo + 1) * cout] += wn[dy, dx, ci, :]
        ms.append(jnp.asarray(m))

        if i == NDEP - 1:                            # last layer: only the conv bias
            scale = np.ones((cout,), np.float32)
            shift = bn.astype(np.float32)
        else:                                        # eval BN (rm=0, rv=1) + bias folded
            s = np.float32(1.0 / math.sqrt(1.0 + 1e-5))
            scale = np.full((cout,), s, np.float32)
            shift = bn.astype(np.float32) * s
        ss.append(jnp.asarray(np.tile(scale, 2 * w_in)[None, :]))
        ts.append(jnp.asarray(np.tile(shift, 2 * w_in)[None, :]))
        w_in *= 2

    kparams = dict(w1bd=jnp.asarray(w1bd), b1t=jnp.asarray(b1t),
                   w2e=jnp.asarray(w2e), ce=jnp.asarray(ce),
                   w2o=jnp.asarray(w2o), co=jnp.asarray(co),
                   m=ms, s=ss, t=ts)
    return raw, kparams


# ------------------------------ forward (jit) ------------------------------------
def generator_forward(params, x_nchw):
    n, _, h, w = x_nchw.shape
    x = x_nchw.astype(jnp.float32)

    # glue (fused by jit): NCHW noise -> the lane-fused "L1" layouts the kernel wants
    def to_l1(t):                                    # (n, C, h, w) -> (n, h, w*C)
        return jnp.transpose(t, (0, 2, 3, 1)).reshape(n, h, w * t.shape[1])

    x_keep = to_l1(x[:, :KEEP])
    x_g = to_l1(x[:, :NGL])
    per = x[:, KEEP:]
    per_e = to_l1(per[:, 0::2])
    per_o = to_l1(per[:, 1::2])

    out = fused_generator_call(params, x_keep, x_g, per_e, per_o)   # (n, H, W*nc)
    h_out = h * 2 ** NDEP
    w_out = w * 2 ** NDEP
    out = out.reshape(n, h_out, w_out, NC)
    return jnp.transpose(out, (0, 3, 1, 2))                          # NCHW


# ------------------------------ pure-XLA reference -------------------------------
def reference_forward(raw, x_nchw):
    """Reference Generator.forward in eval() mode (no Pallas)."""
    y = jnp.transpose(x_nchw, (0, 2, 3, 1)).astype(jnp.float32)      # NHWC
    g = y[..., :NGL]
    hid = jax.nn.relu(jnp.einsum("nhwc,ck->nhwk", g, raw["w1"]) + raw["b1"])
    wv = jnp.einsum("nhwk,kc->nhwc", hid, raw["w2"]) + raw["b2"]
    per = y[..., KEEP:]
    r = (wv + raw["waver"]) * per
    wave = jnp.sin(r[..., 0::2] + r[..., 1::2])                      # eval(): offset == 0
    y = jnp.concatenate([y[..., :KEEP], wave], axis=-1)

    for i, (wc, bc) in enumerate(raw["convs"]):
        y = jnp.repeat(jnp.repeat(y, 2, axis=1), 2, axis=2)          # Upsample(2,'nearest')
        y = jax.lax.conv_general_dilated(
            y, wc, window_strides=(1, 1), padding=[(2, 2), (2, 2)],
            dimension_numbers=("NHWC", "HWIO", "NHWC")) + bc
        if i == NDEP - 1:
            y = jnp.tanh(y)
        else:
            y = jax.nn.relu(y / jnp.sqrt(jnp.float32(1.0 + 1e-5)))   # eval BatchNorm2d
    return jnp.transpose(y, (0, 3, 1, 2))


# ------------------------------ main ----------------------------------------------
if __name__ == "__main__":
    key = jax.random.PRNGKey(0)
    pkey, xkey = jax.random.split(key)

    raw, kparams = init_params(pkey)
    x = jax.random.normal(xkey, (BATCH, N_NOISE_CH, SPATIAL, SPATIAL), jnp.float32)

    fwd = jax.jit(generator_forward)
    out = jax.block_until_ready(fwd(kparams, x))

    expected = (BATCH, NC, SPATIAL * 2 ** NDEP, SPATIAL * 2 ** NDEP)
    assert out.shape == expected, (out.shape, expected)
    assert bool(jnp.all(jnp.isfinite(out)))

    # verify against a pure-XLA reference of the same eval() forward pass
    ref = reference_forward(raw, x)
    max_err = float(jnp.max(jnp.abs(out - ref)))
    assert max_err < 3e-2, max_err

    print("KERNEL_OK")
</pallas_src>

<mosaic_0001>
module attributes {stable_mosaic.version = 11 : i64} {
  func.func @_generator_kernel(%arg0: i32, %arg1: memref<1x8x32xf32, #tpu.memory_space<vmem>>, %arg2: memref<1x8x32xf32, #tpu.memory_space<vmem>>, %arg3: memref<1x8x32xf32, #tpu.memory_space<vmem>>, %arg4: memref<1x8x32xf32, #tpu.memory_space<vmem>>, %arg5: memref<32x64xf32, #tpu.memory_space<vmem>>, %arg6: memref<1x64xf32, #tpu.memory_space<vmem>>, %arg7: memref<64x32xf32, #tpu.memory_space<vmem>>, %arg8: memref<1x32xf32, #tpu.memory_space<vmem>>, %arg9: memref<64x32xf32, #tpu.memory_space<vmem>>, %arg10: memref<1x32xf32, #tpu.memory_space<vmem>>, %arg11: memref<5x64x128xf32, #tpu.memory_space<vmem>>, %arg12: memref<1x128xf32, #tpu.memory_space<vmem>>, %arg13: memref<1x128xf32, #tpu.memory_space<vmem>>, %arg14: memref<5x128x96xf32, #tpu.memory_space<vmem>>, %arg15: memref<1x96xf32, #tpu.memory_space<vmem>>, %arg16: memref<1x96xf32, #tpu.memory_space<vmem>>, %arg17: memref<1x32x96xf32, #tpu.memory_space<vmem>>, %arg18: memref<20x64xf32, #tpu.memory_space<vmem>>, %arg19: memref<36x128xf32, #tpu.memory_space<vmem>>) attributes {dimension_semantics = [#tpu.dimension_semantics<parallel>], iteration_bounds = array<i64: 2>, scalar_prefetch = 0 : i64, scratch_operands = 2 : i64, tpu.core_type = #tpu.core_type<tc>, window_params = [{transform_indices = @transform_0, window_bounds = array<i64: 1, 8, 32>}, {transform_indices = @transform_1, window_bounds = array<i64: 1, 8, 32>}, {transform_indices = @transform_2, window_bounds = array<i64: 1, 8, 32>}, {transform_indices = @transform_3, window_bounds = array<i64: 1, 8, 32>}, {pipeline_mode = #tpu.pipeline_mode<synchronous>, transform_indices = @transform_4, window_bounds = array<i64: 32, 64>}, {pipeline_mode = #tpu.pipeline_mode<synchronous>, transform_indices = @transform_5, window_bounds = array<i64: 1, 64>}, {pipeline_mode = #tpu.pipeline_mode<synchronous>, transform_indices = @transform_6, window_bounds = array<i64: 64, 32>}, {pipeline_mode = #tpu.pipeline_mode<synchronous>, transform_indices = @transform_7, window_bounds = array<i64: 1, 32>}, {pipeline_mode = #tpu.pipeline_mode<synchronous>, transform_indices = @transform_8, window_bounds = array<i64: 64, 32>}, {pipeline_mode = #tpu.pipeline_mode<synchronous>, transform_indices = @transform_9, window_bounds = array<i64: 1, 32>}, {pipeline_mode = #tpu.pipeline_mode<synchronous>, transform_indices = @transform_10, window_bounds = array<i64: 5, 64, 128>}, {pipeline_mode = #tpu.pipeline_mode<synchronous>, transform_indices = @transform_11, window_bounds = array<i64: 1, 128>}, {pipeline_mode = #tpu.pipeline_mode<synchronous>, transform_indices = @transform_12, window_bounds = array<i64: 1, 128>}, {pipeline_mode = #tpu.pipeline_mode<synchronous>, transform_indices = @transform_13, window_bounds = array<i64: 5, 128, 96>}, {pipeline_mode = #tpu.pipeline_mode<synchronous>, transform_indices = @transform_14, window_bounds = array<i64: 1, 96>}, {pipeline_mode = #tpu.pipeline_mode<synchronous>, transform_indices = @transform_15, window_bounds = array<i64: 1, 96>}, {transform_indices = @transform_16, window_bounds = array<i64: 1, 32, 96>}]} {
    %c0 = arith.constant 0 : index
    %c0_0 = arith.constant 0 : index
    %c0_1 = arith.constant 0 : index
    %0 = vector.load %arg2[%c0, %c0_0, %c0_1] : memref<1x8x32xf32, #tpu.memory_space<vmem>>, vector<1x8x32xf32>
    %1 = vector.shape_cast %0 : vector<1x8x32xf32> to vector<8x32xf32>
    %c0_2 = arith.constant 0 : index
    %c0_3 = arith.constant 0 : index
    %2 = vector.load %arg5[%c0_2, %c0_3] : memref<32x64xf32, #tpu.memory_space<vmem>>, vector<32x64xf32>
    %cst = arith.constant dense<0.000000e+00> : vector<8x64xf32>
    %3 = tpu.matmul %1, %2, %cst {dimension_numbers = #tpu.dot_dimension_numbers<[1], [0], [0], [1], [0, 0, 1, 1], [], []>} : vector<8x32xf32>, vector<32x64xf32>, vector<8x64xf32> -> vector<8x64xf32>
    %c0_4 = arith.constant 0 : index
    %c0_5 = arith.constant 0 : index
    %4 = vector.load %arg6[%c0_4, %c0_5] : memref<1x64xf32, #tpu.memory_space<vmem>>, vector<1x64xf32>
    %5 = vector.broadcast %4 : vector<1x64xf32> to vector<8x64xf32>
    %6 = arith.addf %3, %5 : vector<8x64xf32>
    %cst_6 = arith.constant 0.000000e+00 : f32
    %7 = vector.broadcast %cst_6 : f32 to vector<8x64xf32>
    %8 = arith.maximumf %6, %7 : vector<8x64xf32>
    %c0_7 = arith.constant 0 : index
    %c0_8 = arith.constant 0 : index
    %9 = vector.load %arg7[%c0_7, %c0_8] : memref<64x32xf32, #tpu.memory_space<vmem>>, vector<64x32xf32>
    %cst_9 = arith.constant dense<0.000000e+00> : vector<8x32xf32>
    %10 = tpu.matmul %8, %9, %cst_9 {dimension_numbers = #tpu.dot_dimension_numbers<[1], [0], [0], [1], [0, 0, 1, 1], [], []>} : vector<8x64xf32>, vector<64x32xf32>, vector<8x32xf32> -> vector<8x32xf32>
    %c0_10 = arith.constant 0 : index
    %c0_11 = arith.constant 0 : index
    %11 = vector.load %arg8[%c0_10, %c0_11] : memref<1x32xf32, #tpu.memory_space<vmem>>, vector<1x32xf32>
    %12 = vector.broadcast %11 : vector<1x32xf32> to vector<8x32xf32>
    %13 = arith.addf %10, %12 : vector<8x32xf32>
    %c0_12 = arith.constant 0 : index
    %c0_13 = arith.constant 0 : index
    %14 = vector.load %arg9[%c0_12, %c0_13] : memref<64x32xf32, #tpu.memory_space<vmem>>, vector<64x32xf32>
    %cst_14 = arith.constant dense<0.000000e+00> : vector<8x32xf32>
    %15 = tpu.matmul %8, %14, %cst_14 {dimension_numbers = #tpu.dot_dimension_numbers<[1], [0], [0], [1], [0, 0, 1, 1], [], []>} : vector<8x64xf32>, vector<64x32xf32>, vector<8x32xf32> -> vector<8x32xf32>
    %c0_15 = arith.constant 0 : index
    %c0_16 = arith.constant 0 : index
    %16 = vector.load %arg10[%c0_15, %c0_16] : memref<1x32xf32, #tpu.memory_space<vmem>>, vector<1x32xf32>
    %17 = vector.broadcast %16 : vector<1x32xf32> to vector<8x32xf32>
    %18 = arith.addf %15, %17 : vector<8x32xf32>
    %c0_17 = arith.constant 0 : index
    %c0_18 = arith.constant 0 : index
    %c0_19 = arith.constant 0 : index
    %19 = vector.load %arg3[%c0_17, %c0_18, %c0_19] : memref<1x8x32xf32, #tpu.memory_space<vmem>>, vector<1x8x32xf32>
    %20 = vector.shape_cast %19 : vector<1x8x32xf32> to vector<8x32xf32>
    %c0_20 = arith.constant 0 : index
    %c0_21 = arith.constant 0 : index
    %c0_22 = arith.constant 0 : index
    %21 = vector.load %arg4[%c0_20, %c0_21, %c0_22] : memref<1x8x32xf32, #tpu.memory_space<vmem>>, vector<1x8x32xf32>
    %22 = vector.shape_cast %21 : vector<1x8x32xf32> to vector<8x32xf32>
    %23 = arith.mulf %13, %20 : vector<8x32xf32>
    %24 = arith.mulf %18, %22 : vector<8x32xf32>
    %25 = arith.addf %23, %24 : vector<8x32xf32>
    %26 = math.sin %25 : vector<8x32xf32>
    %c0_23 = arith.constant 0 : index
    %c0_24 = arith.constant 0 : index
    %c0_25 = arith.constant 0 : index
    %27 = vector.load %arg1[%c0_23, %c0_24, %c0_25] : memref<1x8x32xf32, #tpu.memory_space<vmem>>, vector<1x8x32xf32>
    %28 = vector.shape_cast %27 : vector<1x8x32xf32> to vector<8x32xf32>
    %29 = tpu.concatenate %28, %26 in 1 : vector<8x32xf32>, vector<8x32xf32> -> vector<8x64xf32>
    %cst_26 = arith.constant 0.000000e+00 : f32
    %30 = vector.broadcast %cst_26 : f32 to vector<20x64xf32>
    %c0_27 = arith.constant 0 : index
    %c0_28 = arith.constant 0 : index
    %31 = vector.load %arg18[%c0_27, %c0_28] : memref<20x64xf32, #tpu.memory_space<vmem>>, vector<20x64xf32>
    tpu.vector_store %arg18[%c0_27, %c0_28], %30 {strides = array<i32>} : memref<20x64xf32, #tpu.memory_space<vmem>>, vector<20x64xf32>,
    %32 = vector.extract_strided_slice %29 {offsets = [0, 0], sizes = [1, 64], strides = [1, 1]} : vector<8x64xf32> to vector<1x64xf32>
    %c2 = arith.constant 2 : index
    %c0_29 = arith.constant 0 : index
    %33 = vector.load %arg18[%c2, %c0_29] : memref<20x64xf32, #tpu.memory_space<vmem>>, vector<1x64xf32>
    tpu.vector_store %arg18[%c2, %c0_29], %32 {strides = array<i32>} : memref<20x64xf32, #tpu.memory_space<vmem>>, vector<1x64xf32>,
    %c3 = arith.constant 3 : index
    %c0_30 = arith.constant 0 : index
    %34 = vector.load %arg18[%c3, %c0_30] : memref<20x64xf32, #tpu.memory_space<vmem>>, vector<1x64xf32>
    tpu.vector_store %arg18[%c3, %c0_30], %32 {strides = array<i32>} : memref<20x64xf32, #tpu.memory_space<vmem>>, vector<1x64xf32>,
    %35 = vector.extract_strided_slice %29 {offsets = [1, 0], sizes = [1, 64], strides = [1, 1]} : vector<8x64xf32> to vector<1x64xf32>
    %c4 = arith.constant 4 : index
    %c0_31 = arith.constant 0 : index
    %36 = vector.load %arg18[%c4, %c0_31] : memref<20x64xf32, #tpu.memory_space<vmem>>, vector<1x64xf32>
    tpu.vector_store %arg18[%c4, %c0_31], %35 {strides = array<i32>} : memref<20x64xf32, #tpu.memory_space<vmem>>, vector<1x64xf32>,
    %c5 = arith.constant 5 : index
    %c0_32 = arith.constant 0 : index
    %37 = vector.load %arg18[%c5, %c0_32] : memref<20x64xf32, #tpu.memory_space<vmem>>, vector<1x64xf32>
    tpu.vector_store %arg18[%c5, %c0_32], %35 {strides = array<i32>} : memref<20x64xf32, #tpu.memory_space<vmem>>, vector<1x64xf32>,
    %38 = vector.extract_strided_slice %29 {offsets = [2, 0], sizes = [1, 64], strides = [1, 1]} : vector<8x64xf32> to vector<1x64xf32>
    %c6 = arith.constant 6 : index
    %c0_33 = arith.constant 0 : index
    %39 = vector.load %arg18[%c6, %c0_33] : memref<20x64xf32, #tpu.memory_space<vmem>>, vector<1x64xf32>
    tpu.vector_store %arg18[%c6, %c0_33], %38 {strides = array<i32>} : memref<20x64xf32, #tpu.memory_space<vmem>>, vector<1x64xf32>,
    %c7 = arith.constant 7 : index
    %c0_34 = arith.constant 0 : index
    %40 = vector.load %arg18[%c7, %c0_34] : memref<20x64xf32, #tpu.memory_space<vmem>>, vector<1x64xf32>
    tpu.vector_store %arg18[%c7, %c0_34], %38 {strides = array<i32>} : memref<20x64xf32, #tpu.memory_space<vmem>>, vector<1x64xf32>,
    %41 = vector.extract_strided_slice %29 {offsets = [3, 0], sizes = [1, 64], strides = [1, 1]} : vector<8x64xf32> to vector<1x64xf32>
    %c8 = arith.constant 8 : index
    %c0_35 = arith.constant 0 : index
    %42 = vector.load %arg18[%c8, %c0_35] : memref<20x64xf32, #tpu.memory_space<vmem>>, vector<1x64xf32>
    tpu.vector_store %arg18[%c8, %c0_35], %41 {strides = array<i32>} : memref<20x64xf32, #tpu.memory_space<vmem>>, vector<1x64xf32>,
    %c9 = arith.constant 9 : index
    %c0_36 = arith.constant 0 : index
    %43 = vector.load %arg18[%c9, %c0_36] : memref<20x64xf32, #tpu.memory_space<vmem>>, vector<1x64xf32>
    tpu.vector_store %arg18[%c9, %c0_36], %41 {strides = array<i32>} : memref<20x64xf32, #tpu.memory_space<vmem>>, vector<1x64xf32>,
    %44 = vector.extract_strided_slice %29 {offsets = [4, 0], sizes = [1, 64], strides = [1, 1]} : vector<8x64xf32> to vector<1x64xf32>
    %c10 = arith.constant 10 : index
    %c0_37 = arith.constant 0 : index
    %45 = vector.load %arg18[%c10, %c0_37] : memref<20x64xf32, #tpu.memory_space<vmem>>, vector<1x64xf32>
    tpu.vector_store %arg18[%c10, %c0_37], %44 {strides = array<i32>} : memref<20x64xf32, #tpu.memory_space<vmem>>, vector<1x64xf32>,
    %c11 = arith.constant 11 : index
    %c0_38 = arith.constant 0 : index
    %46 = vector.load %arg18[%c11, %c0_38] : memref<20x64xf32, #tpu.memory_space<vmem>>, vector<1x64xf32>
    tpu.vector_store %arg18[%c11, %c0_38], %44 {strides = array<i32>} : memref<20x64xf32, #tpu.memory_space<vmem>>, vector<1x64xf32>,
    %47 = vector.extract_strided_slice %29 {offsets = [5, 0], sizes = [1, 64], strides = [1, 1]} : vector<8x64xf32> to vector<1x64xf32>
    %c12 = arith.constant 12 : index
    %c0_39 = arith.constant 0 : index
    %48 = vector.load %arg18[%c12, %c0_39] : memref<20x64xf32, #tpu.memory_space<vmem>>, vector<1x64xf32>
    tpu.vector_store %arg18[%c12, %c0_39], %47 {strides = array<i32>} : memref<20x64xf32, #tpu.memory_space<vmem>>, vector<1x64xf32>,
    %c13 = arith.constant 13 : index
    %c0_40 = arith.constant 0 : index
    %49 = vector.load %arg18[%c13, %c0_40] : memref<20x64xf32, #tpu.memory_space<vmem>>, vector<1x64xf32>
    tpu.vector_store %arg18[%c13, %c0_40], %47 {strides = array<i32>} : memref<20x64xf32, #tpu.memory_space<vmem>>, vector<1x64xf32>,
    %50 = vector.extract_strided_slice %29 {offsets = [6, 0], sizes = [1, 64], strides = [1, 1]} : vector<8x64xf32> to vector<1x64xf32>
    %c14 = arith.constant 14 : index
    %c0_41 = arith.constant 0 : index
    %51 = vector.load %arg18[%c14, %c0_41] : memref<20x64xf32, #tpu.memory_space<vmem>>, vector<1x64xf32>
    tpu.vector_store %arg18[%c14, %c0_41], %50 {strides = array<i32>} : memref<20x64xf32, #tpu.memory_space<vmem>>, vector<1x64xf32>,
    %c15 = arith.constant 15 : index
    %c0_42 = arith.constant 0 : index
    %52 = vector.load %arg18[%c15, %c0_42] : memref<20x64xf32, #tpu.memory_space<vmem>>, vector<1x64xf32>
    tpu.vector_store %arg18[%c15, %c0_42], %50 {strides = array<i32>} : memref<20x64xf32, #tpu.memory_space<vmem>>, vector<1x64xf32>,
    %53 = vector.extract_strided_slice %29 {offsets = [7, 0], sizes = [1, 64], strides = [1, 1]} : vector<8x64xf32> to vector<1x64xf32>
    %c16 = arith.constant 16 : index
    %c0_43 = arith.constant 0 : index
    %54 = vector.load %arg18[%c16, %c0_43] : memref<20x64xf32, #tpu.memory_space<vmem>>, vector<1x64xf32>
    tpu.vector_store %arg18[%c16, %c0_43], %53 {strides = array<i32>} : memref<20x64xf32, #tpu.memory_space<vmem>>, vector<1x64xf32>,
    %c17 = arith.constant 17 : index
    %c0_44 = arith.constant 0 : index
    %55 = vector.load %arg18[%c17, %c0_44] : memref<20x64xf32, #tpu.memory_space<vmem>>, vector<1x64xf32>
    tpu.vector_store %arg18[%c17, %c0_44], %53 {strides = array<i32>} : memref<20x64xf32, #tpu.memory_space<vmem>>, vector<1x64xf32>,
    %cst_45 = arith.constant 0.000000e+00 : f32
    %56 = vector.broadcast %cst_45 : f32 to vector<16x128xf32>
    %c0_46 = arith.constant 0 : index
    %c0_47 = arith.constant 0 : index
    %57 = vector.load %arg18[%c0_46, %c0_47] : memref<20x64xf32, #tpu.memory_space<vmem>>, vector<16x64xf32>
    %c0_48 = arith.constant 0 : index
    %c0_49 = arith.constant 0 : index
    %c0_50 = arith.constant 0 : index
    %58 = vector.load %arg11[%c0_48, %c0_49, %c0_50] : memref<5x64x128xf32, #tpu.memory_space<vmem>>, vector<1x64x128xf32>
    %59 = vector.shape_cast %58 : vector<1x64x128xf32> to vector<64x128xf32>
    %cst_51 = arith.constant dense<0.000000e+00> : vector<16x128xf32>
    %60 = tpu.matmul %57, %59, %cst_51 {dimension_numbers = #tpu.dot_dimension_numbers<[1], [0], [0], [1], [0, 0, 1, 1], [], []>} : vector<16x64xf32>, vector<64x128xf32>, vector<16x128xf32> -> vector<16x128xf32>
    %61 = arith.addf %56, %60 : vector<16x128xf32>
    %c1 = arith.constant 1 : index
    %c0_52 = arith.constant 0 : index
    %62 = vector.load %arg18[%c1, %c0_52] : memref<20x64xf32, #tpu.memory_space<vmem>>, vector<16x64xf32>
    %c1_53 = arith.constant 1 : index
    %c0_54 = arith.constant 0 : index
    %c0_55 = arith.constant 0 : index
    %63 = vector.load %arg11[%c1_53, %c0_54, %c0_55] : memref<5x64x128xf32, #tpu.memory_space<vmem>>, vector<1x64x128xf32>
    %64 = vector.shape_cast %63 : vector<1x64x128xf32> to vector<64x128xf32>
    %cst_56 = arith.constant dense<0.000000e+00> : vector<16x128xf32>
    %65 = tpu.matmul %62, %64, %cst_56 {dimension_numbers = #tpu.dot_dimension_numbers<[1], [0], [0], [1], [0, 0, 1, 1], [], []>} : vector<16x64xf32>, vector<64x128xf32>, vector<16x128xf32> -> vector<16x128xf32>
    %66 = arith.addf %61, %65 : vector<16x128xf32>
    %c2_57 = arith.constant 2 : index
    %c0_58 = arith.constant 0 : index
    %67 = vector.load %arg18[%c2_57, %c0_58] : memref<20x64xf32, #tpu.memory_space<vmem>>, vector<16x64xf32>
    %c2_59 = arith.constant 2 : index
    %c0_60 = arith.constant 0 : index
    %c0_61 = arith.constant 0 : index
    %68 = vector.load %arg11[%c2_59, %c0_60, %c0_61] : memref<5x64x128xf32, #tpu.memory_space<vmem>>, vector<1x64x128xf32>
    %69 = vector.shape_cast %68 : vector<1x64x128xf32> to vector<64x128xf32>
    %cst_62 = arith.constant dense<0.000000e+00> : vector<16x128xf32>
    %70 = tpu.matmul %67, %69, %cst_62 {dimension_numbers = #tpu.dot_dimension_numbers<[1], [0], [0], [1], [0, 0, 1, 1], [], []>} : vector<16x64xf32>, vector<64x128xf32>, vector<16x128xf32> -> vector<16x128xf32>
    %71 = arith.addf %66, %70 : vector<16x128xf32>
    %c3_63 = arith.constant 3 : index
    %c0_64 = arith.constant 0 : index
    %72 = vector.load %arg18[%c3_63, %c0_64] : memref<20x64xf32, #tpu.memory_space<vmem>>, vector<16x64xf32>
    %c3_65 = arith.constant 3 : index
    %c0_66 = arith.constant 0 : index
    %c0_67 = arith.constant 0 : index
    %73 = vector.load %arg11[%c3_65, %c0_66, %c0_67] : memref<5x64x128xf32, #tpu.memory_space<vmem>>, vector<1x64x128xf32>
    %74 = vector.shape_cast %73 : vector<1x64x128xf32> to vector<64x128xf32>
    %cst_68 = arith.constant dense<0.000000e+00> : vector<16x128xf32>
    %75 = tpu.matmul %72, %74, %cst_68 {dimension_numbers = #tpu.dot_dimension_numbers<[1], [0], [0], [1], [0, 0, 1, 1], [], []>} : vector<16x64xf32>, vector<64x128xf32>, vector<16x128xf32> -> vector<16x128xf32>
    %76 = arith.addf %71, %75 : vector<16x128xf32>
    %c4_69 = arith.constant 4 : index
    %c0_70 = arith.constant 0 : index
    %77 = vector.load %arg18[%c4_69, %c0_70] : memref<20x64xf32, #tpu.memory_space<vmem>>, vector<16x64xf32>
    %c4_71 = arith.constant 4 : index
    %c0_72 = arith.constant 0 : index
    %c0_73 = arith.constant 0 : index
    %78 = vector.load %arg11[%c4_71, %c0_72, %c0_73] : memref<5x64x128xf32, #tpu.memory_space<vmem>>, vector<1x64x128xf32>
    %79 = vector.shape_cast %78 : vector<1x64x128xf32> to vector<64x128xf32>
    %cst_74 = arith.constant dense<0.000000e+00> : vector<16x128xf32>
    %80 = tpu.matmul %77, %79, %cst_74 {dimension_numbers = #tpu.dot_dimension_numbers<[1], [0], [0], [1], [0, 0, 1, 1], [], []>} : vector<16x64xf32>, vector<64x128xf32>, vector<16x128xf32> -> vector<16x128xf32>
    %81 = arith.addf %76, %80 : vector<16x128xf32>
    %c0_75 = arith.constant 0 : index
    %c0_76 = arith.constant 0 : index
    %82 = vector.load %arg12[%c0_75, %c0_76] : memref<1x128xf32, #tpu.memory_space<vmem>>, vector<1x128xf32>
    %83 = vector.broadcast %82 : vector<1x128xf32> to vector<16x128xf32>
    %84 = arith.mulf %81, %83 : vector<16x128xf32>
    %c0_77 = arith.constant 0 : index
    %c0_78 = arith.constant 0 : index
    %85 = vector.load %arg13[%c0_77, %c0_78] : memref<1x128xf32, #tpu.memory_space<vmem>>, vector<1x128xf32>
    %86 = vector.broadcast %85 : vector<1x128xf32> to vector<16x128xf32>
    %87 = arith.addf %84, %86 : vector<16x128xf32>
    %cst_79 = arith.constant 0.000000e+00 : f32
    %88 = vector.broadcast %cst_79 : f32 to vector<16x128xf32>
    %89 = arith.maximumf %87, %88 : vector<16x128xf32>
    %cst_80 = arith.constant 0.000000e+00 : f32
    %90 = vector.broadcast %cst_80 : f32 to vector<36x128xf32>
    %c0_81 = arith.constant 0 : index
    %c0_82 = arith.constant 0 : index
    %91 = vector.load %arg19[%c0_81, %c0_82] : memref<36x128xf32, #tpu.memory_space<vmem>>, vector<36x128xf32>
    tpu.vector_store %arg19[%c0_81, %c0_82], %90 {strides = array<i32>} : memref<36x128xf32, #tpu.memory_space<vmem>>, vector<36x128xf32>,
    %92 = vector.extract_strided_slice %89 {offsets = [0, 0], sizes = [1, 128], strides = [1, 1]} : vector<16x128xf32> to vector<1x128xf32>
    %c2_83 = arith.constant 2 : index
    %c0_84 = arith.constant 0 : index
    %93 = vector.load %arg19[%c2_83, %c0_84] : memref<36x128xf32, #tpu.memory_space<vmem>>, vector<1x128xf32>
    tpu.vector_store %arg19[%c2_83, %c0_84], %92 {strides = array<i32>} : memref<36x128xf32, #tpu.memory_space<vmem>>, vector<1x128xf32>,
    %c3_85 = arith.constant 3 : index
    %c0_86 = arith.constant 0 : index
    %94 = vector.load %arg19[%c3_85, %c0_86] : memref<36x128xf32, #tpu.memory_space<vmem>>, vector<1x128xf32>
    tpu.vector_store %arg19[%c3_85, %c0_86], %92 {strides = array<i32>} : memref<36x128xf32, #tpu.memory_space<vmem>>, vector<1x128xf32>,
    %95 = vector.extract_strided_slice %89 {offsets = [1, 0], sizes = [1, 128], strides = [1, 1]} : vector<16x128xf32> to vector<1x128xf32>
    %c4_87 = arith.constant 4 : index
    %c0_88 = arith.constant 0 : index
    %96 = vector.load %arg19[%c4_87, %c0_88] : memref<36x128xf32, #tpu.memory_space<vmem>>, vector<1x128xf32>
    tpu.vector_store %arg19[%c4_87, %c0_88], %95 {strides = array<i32>} : memref<36x128xf32, #tpu.memory_space<vmem>>, vector<1x128xf32>,
    %c5_89 = arith.constant 5 : index
    %c0_90 = arith.constant 0 : index
    %97 = vector.load %arg19[%c5_89, %c0_90] : memref<36x128xf32, #tpu.memory_space<vmem>>, vector<1x128xf32>
    tpu.vector_store %arg19[%c5_89, %c0_90], %95 {strides = array<i32>} : memref<36x128xf32, #tpu.memory_space<vmem>>, vector<1x128xf32>,
    %98 = vector.extract_strided_slice %89 {offsets = [2, 0], sizes = [1, 128], strides = [1, 1]} : vector<16x128xf32> to vector<1x128xf32>
    %c6_91 = arith.constant 6 : index
    %c0_92 = arith.constant 0 : index
    %99 = vector.load %arg19[%c6_91, %c0_92] : memref<36x128xf32, #tpu.memory_space<vmem>>, vector<1x128xf32>
    tpu.vector_store %arg19[%c6_91, %c0_92], %98 {strides = array<i32>} : memref<36x128xf32, #tpu.memory_space<vmem>>, vector<1x128xf32>,
    %c7_93 = arith.constant 7 : index
    %c0_94 = arith.constant 0 : index
    %100 = vector.load %arg19[%c7_93, %c0_94] : memref<36x128xf32, #tpu.memory_space<vmem>>, vector<1x128xf32>
    tpu.vector_store %arg19[%c7_93, %c0_94], %98 {strides = array<i32>} : memref<36x128xf32, #tpu.memory_space<vmem>>, vector<1x128xf32>,
    %101 = vector.extract_strided_slice %89 {offsets = [3, 0], sizes = [1, 128], strides = [1, 1]} : vector<16x128xf32> to vector<1x128xf32>
    %c8_95 = arith.constant 8 : index
    %c0_96 = arith.constant 0 : index
    %102 = vector.load %arg19[%c8_95, %c0_96] : memref<36x128xf32, #tpu.memory_space<vmem>>, vector<1x128xf32>
    tpu.vector_store %arg19[%c8_95, %c0_96], %101 {strides = array<i32>} : memref<36x128xf32, #tpu.memory_space<vmem>>, vector<1x128xf32>,
    %c9_97 = arith.constant 9 : index
    %c0_98 = arith.constant 0 : index
    %103 = vector.load %arg19[%c9_97, %c0_98] : memref<36x128xf32, #tpu.memory_space<vmem>>, vector<1x128xf32>
    tpu.vector_store %arg19[%c9_97, %c0_98], %101 {strides = array<i32>} : memref<36x128xf32, #tpu.memory_space<vmem>>, vector<1x128xf32>,
    %104 = vector.extract_strided_slice %89 {offsets = [4, 0], sizes = [1, 128], strides = [1, 1]} : vector<16x128xf32> to vector<1x128xf32>
    %c10_99 = arith.constant 10 : index
    %c0_100 = arith.constant 0 : index
    %105 = vector.load %arg19[%c10_99, %c0_100] : memref<36x128xf32, #tpu.memory_space<vmem>>, vector<1x128xf32>
    tpu.vector_store %arg19[%c10_99, %c0_100], %104 {strides = array<i32>} : memref<36x128xf32, #tpu.memory_space<vmem>>, vector<1x128xf32>,
    %c11_101 = arith.constant 11 : index
    %c0_102 = arith.constant 0 : index
    %106 = vector.load %arg19[%c11_101, %c0_102] : memref<36x128xf32, #tpu.memory_space<vmem>>, vector<1x128xf32>
    tpu.vector_store %arg19[%c11_101, %c0_102], %104 {strides = array<i32>} : memref<36x128xf32, #tpu.memory_space<vmem>>, vector<1x128xf32>,
    %107 = vector.extract_strided_slice %89 {offsets = [5, 0], sizes = [1, 128], strides = [1, 1]} : vector<16x128xf32> to vector<1x128xf32>
    %c12_103 = arith.constant 12 : index
    %c0_104 = arith.constant 0 : index
    %108 = vector.load %arg19[%c12_103, %c0_104] : memref<36x128xf32, #tpu.memory_space<vmem>>, vector<1x128xf32>
    tpu.vector_store %arg19[%c12_103, %c0_104], %107 {strides = array<i32>} : memref<36x128xf32, #tpu.memory_space<vmem>>, vector<1x128xf32>,
    %c13_105 = arith.constant 13 : index
    %c0_106 = arith.constant 0 : index
    %109 = vector.load %arg19[%c13_105, %c0_106] : memref<36x128xf32, #tpu.memory_space<vmem>>, vector<1x128xf32>
    tpu.vector_store %arg19[%c13_105, %c0_106], %107 {strides = array<i32>} : memref<36x128xf32, #tpu.memory_space<vmem>>, vector<1x128xf32>,
    %110 = vector.extract_strided_slice %89 {offsets = [6, 0], sizes = [1, 128], strides = [1, 1]} : vector<16x128xf32> to vector<1x128xf32>
    %c14_107 = arith.constant 14 : index
    %c0_108 = arith.constant 0 : index
    %111 = vector.load %arg19[%c14_107, %c0_108] : memref<36x128xf32, #tpu.memory_space<vmem>>, vector<1x128xf32>
    tpu.vector_store %arg19[%c14_107, %c0_108], %110 {strides = array<i32>} : memref<36x128xf32, #tpu.memory_space<vmem>>, vector<1x128xf32>,
    %c15_109 = arith.constant 15 : index
    %c0_110 = arith.constant 0 : index
    %112 = vector.load %arg19[%c15_109, %c0_110] : memref<36x128xf32, #tpu.memory_space<vmem>>, vector<1x128xf32>
    tpu.vector_store %arg19[%c15_109, %c0_110], %110 {strides = array<i32>} : memref<36x128xf32, #tpu.memory_space<vmem>>, vector<1x128xf32>,
    %113 = vector.extract_strided_slice %89 {offsets = [7, 0], sizes = [1, 128], strides = [1, 1]} : vector<16x128xf32> to vector<1x128xf32>
    %c16_111 = arith.constant 16 : index
    %c0_112 = arith.constant 0 : index
    %114 = vector.load %arg19[%c16_111, %c0_112] : memref<36x128xf32, #tpu.memory_space<vmem>>, vector<1x128xf32>
    tpu.vector_store %arg19[%c16_111, %c0_112], %113 {strides = array<i32>} : memref<36x128xf32, #tpu.memory_space<vmem>>, vector<1x128xf32>,
    %c17_113 = arith.constant 17 : index
    %c0_114 = arith.constant 0 : index
    %115 = vector.load %arg19[%c17_113, %c0_114] : memref<36x128xf32, #tpu.memory_space<vmem>>, vector<1x128xf32>
    tpu.vector_store %arg19[%c17_113, %c0_114], %113 {strides = array<i32>} : memref<36x128xf32, #tpu.memory_space<vmem>>, vector<1x128xf32>,
    %116 = vector.extract_strided_slice %89 {offsets = [8, 0], sizes = [1, 128], strides = [1, 1]} : vector<16x128xf32> to vector<1x128xf32>
    %c18 = arith.constant 18 : index
    %c0_115 = arith.constant 0 : index
    %117 = vector.load %arg19[%c18, %c0_115] : memref<36x128xf32, #tpu.memory_space<vmem>>, vector<1x128xf32>
    tpu.vector_store %arg19[%c18, %c0_115], %116 {strides = array<i32>} : memref<36x128xf32, #tpu.memory_space<vmem>>, vector<1x128xf32>,
    %c19 = arith.constant 19 : index
    %c0_116 = arith.constant 0 : index
    %118 = vector.load %arg19[%c19, %c0_116] : memref<36x128xf32, #tpu.memory_space<vmem>>, vector<1x128xf32>
    tpu.vector_store %arg19[%c19, %c0_116], %116 {strides = array<i32>} : memref<36x128xf32, #tpu.memory_space<vmem>>, vector<1x128xf32>,
    %119 = vector.extract_strided_slice %89 {offsets = [9, 0], sizes = [1, 128], strides = [1, 1]} : vector<16x128xf32> to vector<1x128xf32>
    %c20 = arith.constant 20 : index
    %c0_117 = arith.constant 0 : index
    %120 = vector.load %arg19[%c20, %c0_117] : memref<36x128xf32, #tpu.memory_space<vmem>>, vector<1x128xf32>
    tpu.vector_store %arg19[%c20, %c0_117], %119 {strides = array<i32>} : memref<36x128xf32, #tpu.memory_space<vmem>>, vector<1x128xf32>,
    %c21 = arith.constant 21 : index
    %c0_118 = arith.constant 0 : index
    %121 = vector.load %arg19[%c21, %c0_118] : memref<36x128xf32, #tpu.memory_space<vmem>>, vector<1x128xf32>
    tpu.vector_store %arg19[%c21, %c0_118], %119 {strides = array<i32>} : memref<36x128xf32, #tpu.memory_space<vmem>>, vector<1x128xf32>,
    %122 = vector.extract_strided_slice %89 {offsets = [10, 0], sizes = [1, 128], strides = [1, 1]} : vector<16x128xf32> to vector<1x128xf32>
    %c22 = arith.constant 22 : index
    %c0_119 = arith.constant 0 : index
    %123 = vector.load %arg19[%c22, %c0_119] : memref<36x128xf32, #tpu.memory_space<vmem>>, vector<1x128xf32>
    tpu.vector_store %arg19[%c22, %c0_119], %122 {strides = array<i32>} : memref<36x128xf32, #tpu.memory_space<vmem>>, vector<1x128xf32>,
    %c23 = arith.constant 23 : index
    %c0_120 = arith.constant 0 : index
    %124 = vector.load %arg19[%c23, %c0_120] : memref<36x128xf32, #tpu.memory_space<vmem>>, vector<1x128xf32>
    tpu.vector_store %arg19[%c23, %c0_120], %122 {strides = array<i32>} : memref<36x128xf32, #tpu.memory_space<vmem>>, vector<1x128xf32>,
    %125 = vector.extract_strided_slice %89 {offsets = [11, 0], sizes = [1, 128], strides = [1, 1]} : vector<16x128xf32> to vector<1x128xf32>
    %c24 = arith.constant 24 : index
    %c0_121 = arith.constant 0 : index
    %126 = vector.load %arg19[%c24, %c0_121] : memref<36x128xf32, #tpu.memory_space<vmem>>, vector<1x128xf32>
    tpu.vector_store %arg19[%c24, %c0_121], %125 {strides = array<i32>} : memref<36x128xf32, #tpu.memory_space<vmem>>, vector<1x128xf32>,
    %c25 = arith.constant 25 : index
    %c0_122 = arith.constant 0 : index
    %127 = vector.load %arg19[%c25, %c0_122] : memref<36x128xf32, #tpu.memory_space<vmem>>, vector<1x128xf32>
    tpu.vector_store %arg19[%c25, %c0_122], %125 {strides = array<i32>} : memref<36x128xf32, #tpu.memory_space<vmem>>, vector<1x128xf32>,
    %128 = vector.extract_strided_slice %89 {offsets = [12, 0], sizes = [1, 128], strides = [1, 1]} : vector<16x128xf32> to vector<1x128xf32>
    %c26 = arith.constant 26 : index
    %c0_123 = arith.constant 0 : index
    %129 = vector.load %arg19[%c26, %c0_123] : memref<36x128xf32, #tpu.memory_space<vmem>>, vector<1x128xf32>
    tpu.vector_store %arg19[%c26, %c0_123], %128 {strides = array<i32>} : memref<36x128xf32, #tpu.memory_space<vmem>>, vector<1x128xf32>,
    %c27 = arith.constant 27 : index
    %c0_124 = arith.constant 0 : index
    %130 = vector.load %arg19[%c27, %c0_124] : memref<36x128xf32, #tpu.memory_space<vmem>>, vector<1x128xf32>
    tpu.vector_store %arg19[%c27, %c0_124], %128 {strides = array<i32>} : memref<36x128xf32, #tpu.memory_space<vmem>>, vector<1x128xf32>,
    %131 = vector.extract_strided_slice %89 {offsets = [13, 0], sizes = [1, 128], strides = [1, 1]} : vector<16x128xf32> to vector<1x128xf32>
    %c28 = arith.constant 28 : index
    %c0_125 = arith.constant 0 : index
    %132 = vector.load %arg19[%c28, %c0_125] : memref<36x128xf32, #tpu.memory_space<vmem>>, vector<1x128xf32>
    tpu.vector_store %arg19[%c28, %c0_125], %131 {strides = array<i32>} : memref<36x128xf32, #tpu.memory_space<vmem>>, vector<1x128xf32>,
    %c29 = arith.constant 29 : index
    %c0_126 = arith.constant 0 : index
    %133 = vector.load %arg19[%c29, %c0_126] : memref<36x128xf32, #tpu.memory_space<vmem>>, vector<1x128xf32>
    tpu.vector_store %arg19[%c29, %c0_126], %131 {strides = array<i32>} : memref<36x128xf32, #tpu.memory_space<vmem>>, vector<1x128xf32>,
    %134 = vector.extract_strided_slice %89 {offsets = [14, 0], sizes = [1, 128], strides = [1, 1]} : vector<16x128xf32> to vector<1x128xf32>
    %c30 = arith.constant 30 : index
    %c0_127 = arith.constant 0 : index
    %135 = vector.load %arg19[%c30, %c0_127] : memref<36x128xf32, #tpu.memory_space<vmem>>, vector<1x128xf32>
    tpu.vector_store %arg19[%c30, %c0_127], %134 {strides = array<i32>} : memref<36x128xf32, #tpu.memory_space<vmem>>, vector<1x128xf32>,
    %c31 = arith.constant 31 : index
    %c0_128 = arith.constant 0 : index
    %136 = vector.load %arg19[%c31, %c0_128] : memref<36x128xf32, #tpu.memory_space<vmem>>, vector<1x128xf32>
    tpu.vector_store %arg19[%c31, %c0_128], %134 {strides = array<i32>} : memref<36x128xf32, #tpu.memory_space<vmem>>, vector<1x128xf32>,
    %137 = vector.extract_strided_slice %89 {offsets = [15, 0], sizes = [1, 128], strides = [1, 1]} : vector<16x128xf32> to vector<1x128xf32>
    %c32 = arith.constant 32 : index
    %c0_129 = arith.constant 0 : index
    %138 = vector.load %arg19[%c32, %c0_129] : memref<36x128xf32, #tpu.memory_space<vmem>>, vector<1x128xf32>
    tpu.vector_store %arg19[%c32, %c0_129], %137 {strides = array<i32>} : memref<36x128xf32, #tpu.memory_space<vmem>>, vector<1x128xf32>,
    %c33 = arith.constant 33 : index
    %c0_130 = arith.constant 0 : index
    %139 = vector.load %arg19[%c33, %c0_130] : memref<36x128xf32, #tpu.memory_space<vmem>>, vector<1x128xf32>
    tpu.vector_store %arg19[%c33, %c0_130], %137 {strides = array<i32>} : memref<36x128xf32, #tpu.memory_space<vmem>>, vector<1x128xf32>,
    %cst_131 = arith.constant 0.000000e+00 : f32
    %140 = vector.broadcast %cst_131 : f32 to vector<32x96xf32>
    %c0_132 = arith.constant 0 : index
    %c0_133 = arith.constant 0 : index
    %141 = vector.load %arg19[%c0_132, %c0_133] : memref<36x128xf32, #tpu.memory_space<vmem>>, vector<32x128xf32>
    %c0_134 = arith.constant 0 : index
    %c0_135 = arith.constant 0 : index
    %c0_136 = arith.constant 0 : index
    %142 = vector.load %arg14[%c0_134, %c0_135, %c0_136] : memref<5x128x96xf32, #tpu.memory_space<vmem>>, vector<1x128x96xf32>
    %143 = vector.shape_cast %142 : vector<1x128x96xf32> to vector<128x96xf32>
    %cst_137 = arith.constant dense<0.000000e+00> : vector<32x96xf32>
    %144 = tpu.matmul %141, %143, %cst_137 {dimension_numbers = #tpu.dot_dimension_numbers<[1], [0], [0], [1], [0, 0, 1, 1], [], []>} : vector<32x128xf32>, vector<128x96xf32>, vector<32x96xf32> -> vector<32x96xf32>
    %145 = arith.addf %140, %144 : vector<32x96xf32>
    %c1_138 = arith.constant 1 : index
    %c0_139 = arith.constant 0 : index
    %146 = vector.load %arg19[%c1_138, %c0_139] : memref<36x128xf32, #tpu.memory_space<vmem>>, vector<32x128xf32>
    %c1_140 = arith.constant 1 : index
    %c0_141 = arith.constant 0 : index
    %c0_142 = arith.constant 0 : index
    %147 = vector.load %arg14[%c1_140, %c0_141, %c0_142] : memref<5x128x96xf32, #tpu.memory_space<vmem>>, vector<1x128x96xf32>
    %148 = vector.shape_cast %147 : vector<1x128x96xf32> to vector<128x96xf32>
    %cst_143 = arith.constant dense<0.000000e+00> : vector<32x96xf32>
    %149 = tpu.matmul %146, %148, %cst_143 {dimension_numbers = #tpu.dot_dimension_numbers<[1], [0], [0], [1], [0, 0, 1, 1], [], []>} : vector<32x128xf32>, vector<128x96xf32>, vector<32x96xf32> -> vector<32x96xf32>
    %150 = arith.addf %145, %149 : vector<32x96xf32>
    %c2_144 = arith.constant 2 : index
    %c0_145 = arith.constant 0 : index
    %151 = vector.load %arg19[%c2_144, %c0_145] : memref<36x128xf32, #tpu.memory_space<vmem>>, vector<32x128xf32>
    %c2_146 = arith.constant 2 : index
    %c0_147 = arith.constant 0 : index
    %c0_148 = arith.constant 0 : index
    %152 = vector.load %arg14[%c2_146, %c0_147, %c0_148] : memref<5x128x96xf32, #tpu.memory_space<vmem>>, vector<1x128x96xf32>
    %153 = vector.shape_cast %152 : vector<1x128x96xf32> to vector<128x96xf32>
    %cst_149 = arith.constant dense<0.000000e+00> : vector<32x96xf32>
    %154 = tpu.matmul %151, %153, %cst_149 {dimension_numbers = #tpu.dot_dimension_numbers<[1], [0], [0], [1], [0, 0, 1, 1], [], []>} : vector<32x128xf32>, vector<128x96xf32>, vector<32x96xf32> -> vector<32x96xf32>
    %155 = arith.addf %150, %154 : vector<32x96xf32>
    %c3_150 = arith.constant 3 : index
    %c0_151 = arith.constant 0 : index
    %156 = vector.load %arg19[%c3_150, %c0_151] : memref<36x128xf32, #tpu.memory_space<vmem>>, vector<32x128xf32>
    %c3_152 = arith.constant 3 : index
    %c0_153 = arith.constant 0 : index
    %c0_154 = arith.constant 0 : index
    %157 = vector.load %arg14[%c3_152, %c0_153, %c0_154] : memref<5x128x96xf32, #tpu.memory_space<vmem>>, vector<1x128x96xf32>
    %158 = vector.shape_cast %157 : vector<1x128x96xf32> to vector<128x96xf32>
    %cst_155 = arith.constant dense<0.000000e+00> : vector<32x96xf32>
    %159 = tpu.matmul %156, %158, %cst_155 {dimension_numbers = #tpu.dot_dimension_numbers<[1], [0], [0], [1], [0, 0, 1, 1], [], []>} : vector<32x128xf32>, vector<128x96xf32>, vector<32x96xf32> -> vector<32x96xf32>
    %160 = arith.addf %155, %159 : vector<32x96xf32>
    %c4_156 = arith.constant 4 : index
    %c0_157 = arith.constant 0 : index
    %161 = vector.load %arg19[%c4_156, %c0_157] : memref<36x128xf32, #tpu.memory_space<vmem>>, vector<32x128xf32>
    %c4_158 = arith.constant 4 : index
    %c0_159 = arith.constant 0 : index
    %c0_160 = arith.constant 0 : index
    %162 = vector.load %arg14[%c4_158, %c0_159, %c0_160] : memref<5x128x96xf32, #tpu.memory_space<vmem>>, vector<1x128x96xf32>
    %163 = vector.shape_cast %162 : vector<1x128x96xf32> to vector<128x96xf32>
    %cst_161 = arith.constant dense<0.000000e+00> : vector<32x96xf32>
    %164 = tpu.matmul %161, %163, %cst_161 {dimension_numbers = #tpu.dot_dimension_numbers<[1], [0], [0], [1], [0, 0, 1, 1], [], []>} : vector<32x128xf32>, vector<128x96xf32>, vector<32x96xf32> -> vector<32x96xf32>
    %165 = arith.addf %160, %164 : vector<32x96xf32>
    %c0_162 = arith.constant 0 : index
    %c0_163 = arith.constant 0 : index
    %166 = vector.load %arg15[%c0_162, %c0_163] : memref<1x96xf32, #tpu.memory_space<vmem>>, vector<1x96xf32>
    %167 = vector.broadcast %166 : vector<1x96xf32> to vector<32x96xf32>
    %168 = arith.mulf %165, %167 : vector<32x96xf32>
    %c0_164 = arith.constant 0 : index
    %c0_165 = arith.constant 0 : index
    %169 = vector.load %arg16[%c0_164, %c0_165] : memref<1x96xf32, #tpu.memory_space<vmem>>, vector<1x96xf32>
    %170 = vector.broadcast %169 : vector<1x96xf32> to vector<32x96xf32>
    %171 = arith.addf %168, %170 : vector<32x96xf32>
    %172 = math.tanh %171 : vector<32x96xf32>
    %173 = vector.shape_cast %172 : vector<32x96xf32> to vector<1x32x96xf32>
    %c0_166 = arith.constant 0 : index
    %c0_167 = arith.constant 0 : index
    %c0_168 = arith.constant 0 : index
    %174 = vector.load %arg17[%c0_166, %c0_167, %c0_168] : memref<1x32x96xf32, #tpu.memory_space<vmem>>, vector<1x32x96xf32>
    tpu.vector_store %arg17[%c0_166, %c0_167, %c0_168], %173 {strides = array<i32>} : memref<1x32x96xf32, #tpu.memory_space<vmem>>, vector<1x32x96xf32>,
    return
  }
  func.func @transform_0(%arg0: i32) -> (i32, i32, i32) {
    %c0_i32 = arith.constant 0 : i32
    %c0_i32_0 = arith.constant 0 : i32
    %c0_i32_1 = arith.constant 0 : i32
    return %arg0, %c0_i32, %c0_i32_0 : i32, i32, i32
  }
  func.func @transform_1(%arg0: i32) -> (i32, i32, i32) {
    %c0_i32 = arith.constant 0 : i32
    %c0_i32_0 = arith.constant 0 : i32
    %c0_i32_1 = arith.constant 0 : i32
    return %arg0, %c0_i32, %c0_i32_0 : i32, i32, i32
  }
  func.func @transform_2(%arg0: i32) -> (i32, i32, i32) {
    %c0_i32 = arith.constant 0 : i32
    %c0_i32_0 = arith.constant 0 : i32
    %c0_i32_1 = arith.constant 0 : i32
    return %arg0, %c0_i32, %c0_i32_0 : i32, i32, i32
  }
  func.func @transform_3(%arg0: i32) -> (i32, i32, i32) {
    %c0_i32 = arith.constant 0 : i32
    %c0_i32_0 = arith.constant 0 : i32
    %c0_i32_1 = arith.constant 0 : i32
    return %arg0, %c0_i32, %c0_i32_0 : i32, i32, i32
  }
  func.func @transform_4(%arg0: i32) -> (i32, i32) {
    %c0_i32 = arith.constant 0 : i32
    %c0_i32_0 = arith.constant 0 : i32
    %c0_i32_1 = arith.constant 0 : i32
    return %c0_i32, %c0_i32_0 : i32, i32
  }
  func.func @transform_5(%arg0: i32) -> (i32, i32) {
    %c0_i32 = arith.constant 0 : i32
    %c0_i32_0 = arith.constant 0 : i32
    %c0_i32_1 = arith.constant 0 : i32
    return %c0_i32, %c0_i32_0 : i32, i32
  }
  func.func @transform_6(%arg0: i32) -> (i32, i32) {
    %c0_i32 = arith.constant 0 : i32
    %c0_i32_0 = arith.constant 0 : i32
    %c0_i32_1 = arith.constant 0 : i32
    return %c0_i32, %c0_i32_0 : i32, i32
  }
  func.func @transform_7(%arg0: i32) -> (i32, i32) {
    %c0_i32 = arith.constant 0 : i32
    %c0_i32_0 = arith.constant 0 : i32
    %c0_i32_1 = arith.constant 0 : i32
    return %c0_i32, %c0_i32_0 : i32, i32
  }
  func.func @transform_8(%arg0: i32) -> (i32, i32) {
    %c0_i32 = arith.constant 0 : i32
    %c0_i32_0 = arith.constant 0 : i32
    %c0_i32_1 = arith.constant 0 : i32
    return %c0_i32, %c0_i32_0 : i32, i32
  }
  func.func @transform_9(%arg0: i32) -> (i32, i32) {
    %c0_i32 = arith.constant 0 : i32
    %c0_i32_0 = arith.constant 0 : i32
    %c0_i32_1 = arith.constant 0 : i32
    return %c0_i32, %c0_i32_0 : i32, i32
  }
  func.func @transform_10(%arg0: i32) -> (i32, i32, i32) {
    %c0_i32 = arith.constant 0 : i32
    %c0_i32_0 = arith.constant 0 : i32
    %c0_i32_1 = arith.constant 0 : i32
    %c0_i32_2 = arith.constant 0 : i32
    return %c0_i32, %c0_i32_0, %c0_i32_1 : i32, i32, i32
  }
  func.func @transform_11(%arg0: i32) -> (i32, i32) {
    %c0_i32 = arith.constant 0 : i32
    %c0_i32_0 = arith.constant 0 : i32
    %c0_i32_1 = arith.constant 0 : i32
    return %c0_i32, %c0_i32_0 : i32, i32
  }
  func.func @transform_12(%arg0: i32) -> (i32, i32) {
    %c0_i32 = arith.constant 0 : i32
    %c0_i32_0 = arith.constant 0 : i32
    %c0_i32_1 = arith.constant 0 : i32
    return %c0_i32, %c0_i32_0 : i32, i32
  }
  func.func @transform_13(%arg0: i32) -> (i32, i32, i32) {
    %c0_i32 = arith.constant 0 : i32
    %c0_i32_0 = arith.constant 0 : i32
    %c0_i32_1 = arith.constant 0 : i32
    %c0_i32_2 = arith.constant 0 : i32
    return %c0_i32, %c0_i32_0, %c0_i32_1 : i32, i32, i32
  }
  func.func @transform_14(%arg0: i32) -> (i32, i32) {
    %c0_i32 = arith.constant 0 : i32
    %c0_i32_0 = arith.constant 0 : i32
    %c0_i32_1 = arith.constant 0 : i32
    return %c0_i32, %c0_i32_0 : i32, i32
  }
  func.func @transform_15(%arg0: i32) -> (i32, i32) {
    %c0_i32 = arith.constant 0 : i32
    %c0_i32_0 = arith.constant 0 : i32
    %c0_i32_1 = arith.constant 0 : i32
    return %c0_i32, %c0_i32_0 : i32, i32
  }
  func.func @transform_16(%arg0: i32) -> (i32, i32, i32) {
    %c0_i32 = arith.constant 0 : i32
    %c0_i32_0 = arith.constant 0 : i32
    %c0_i32_1 = arith.constant 0 : i32
    return %arg0, %c0_i32, %c0_i32_0 : i32, i32, i32
  }
}

</mosaic_0001>

<llo_original>
// kernel: generator_forward.1
$region0: #{generator_forward.1}
  #allocation0 [shape = 'u32[]', space=smem, size = 0x4, offset = 0x4, fixed_abs, tag = 'smem constant byte address 0x4 - core index']
  #allocation1 [shape = 'u32[144,128]{1,0:T(1,128)}', space=vmem, size = 0x12000, scoped, tag = 'internal scratch']
  #allocation2 [shape = 'f32[20,64]{1,0:T(8,128)}', space=vmem, size = 0x3000, scoped, tag = 'scratch operand']
  #allocation3 [shape = 'f32[36,128]{1,0:T(8,128)}', space=vmem, size = 0x5000, scoped, tag = 'scratch operand']
  %s0 = inlined_call_operand.vmem [shape: f32[2,8,32], index: 0, kind: input, shape index: {}, may-alias: {0,1}]
  %s1 = inlined_call_operand.vmem [shape: f32[2,8,32], index: 1, kind: input, shape index: {}, may-alias: {0,1}]
  %s2 = inlined_call_operand.vmem [shape: f32[2,8,32], index: 2, kind: input, shape index: {}]
  %s3 = inlined_call_operand.vmem [shape: f32[2,8,32], index: 3, kind: input, shape index: {}]
  %s4 = inlined_call_operand.vmem [shape: f32[32,64], index: 4, kind: input, shape index: {}]
  %s5 = inlined_call_operand.vmem [shape: f32[1,64], index: 5, kind: input, shape index: {}]
  %s6 = inlined_call_operand.vmem [shape: f32[64,32], index: 6, kind: input, shape index: {}]
  %s7 = inlined_call_operand.vmem [shape: f32[1,32], index: 7, kind: input, shape index: {}]
  %s8 = inlined_call_operand.vmem [shape: f32[64,32], index: 8, kind: input, shape index: {}]
  %s9 = inlined_call_operand.vmem [shape: f32[1,32], index: 9, kind: input, shape index: {}]
  %s10 = inlined_call_operand.vmem [shape: f32[5,64,128], index: 10, kind: input, shape index: {}]
  %s11 = inlined_call_operand.vmem [shape: f32[1,128], index: 11, kind: input, shape index: {}]
  %s12 = inlined_call_operand.vmem [shape: f32[1,128], index: 12, kind: input, shape index: {}]
  %s13 = inlined_call_operand.vmem [shape: f32[5,128,96], index: 13, kind: input, shape index: {}]
  %s14 = inlined_call_operand.vmem [shape: f32[1,96], index: 14, kind: input, shape index: {}]
  %s15 = inlined_call_operand.vmem [shape: f32[1,96], index: 15, kind: input, shape index: {}]
  %s16 = inlined_call_operand.vmem [shape: f32[2,32,96], index: 16, kind: output, shape index: {}]
  %s17 = sld [smem:[#allocation0]]
  $region97: #{generator_forward.1} parent=0
    _
  %s19 = ssub.s32 1, %s17
  %s20 = scalar_select 0, %s19, %s17
  loop: start=0, step=1, limit=4
  $region2: #{generator_forward.1} parent=0 // loop_pre_header
    _
  $region3: #{generator_forward.1} parent=0 // loop_header
    %s22 = sphi 0, %s26
    %p23 = scmp.ge.s32.totalorder %s22, 4
    %s32 = sphi 0, %s34
    %s35 = sphi 0, %s32
    %s36 = sphi 0, %s35
    %s52 = sphi 0, %s36
    %s58 = sphi 0, %s60
    %s61 = sphi 0, %s58
    %s62 = sphi 0, %s61
    %s78 = sphi 0, %s62
    %s84 = sphi 0, %s86
    %s87 = sphi 0, %s84
    %s88 = sphi 0, %s87
    %s104 = sphi 0, %s88
    %s110 = sphi 0, %s112
    %s113 = sphi 0, %s110
    %s114 = sphi 0, %s113
    %s130 = sphi 0, %s114
    %s134 = sphi 0, %s134
    %s136 = sphi 0, %s134
    %s137 = sphi 0, %s136
    %s151 = sphi 0, %s137
    %s155 = sphi 0, %s155
    %s157 = sphi 0, %s155
    %s158 = sphi 0, %s157
    %s172 = sphi 0, %s158
    %s176 = sphi 0, %s176
    %s178 = sphi 0, %s176
    %s179 = sphi 0, %s178
    %s193 = sphi 0, %s179
    %s197 = sphi 0, %s197
    %s199 = sphi 0, %s197
    %s200 = sphi 0, %s199
    %s214 = sphi 0, %s200
    %s218 = sphi 0, %s218
    %s220 = sphi 0, %s218
    %s221 = sphi 0, %s220
    %s235 = sphi 0, %s221
    %s239 = sphi 0, %s239
    %s241 = sphi 0, %s239
    %s242 = sphi 0, %s241
    %s256 = sphi 0, %s242
    %s260 = sphi 0, %s260
    %s262 = sphi 0, %s260
    %s263 = sphi 0, %s262
    %s277 = sphi 0, %s263
    %s281 = sphi 0, %s281
    %s283 = sphi 0, %s281
    %s284 = sphi 0, %s283
    %s298 = sphi 0, %s284
    %s302 = sphi 0, %s302
    %s304 = sphi 0, %s302
    %s305 = sphi 0, %s304
    %s319 = sphi 0, %s305
    %s323 = sphi 0, %s323
    %s325 = sphi 0, %s323
    %s326 = sphi 0, %s325
    %s340 = sphi 0, %s326
    %s344 = sphi 0, %s344
    %s346 = sphi 0, %s344
    %s347 = sphi 0, %s346
    %s361 = sphi 0, %s347
    %s365 = sphi 0, %s365
    %s367 = sphi 0, %s365
    %s368 = sphi 0, %s367
    %s382 = sphi 0, %s368
    %s388 = sphi 0, %s390
    %s391 = sphi 0, %s388
    %s392 = sphi 0, %s391
    %s408 = sphi 0, %s392
  $region4: #{generator_forward.1} parent=0 // loop_header_branch
    %25 = sbr.rel (%p23) target = $region8
  $region5: #{generator_forward.1} parent=0 // loop_body
    %s27 = ssub.s32 %s22, 1
    %s28 = ssub.s32 %s22, 2
    %s29 = sadd.s32 %s22, 1
    %s30 = ssub.s32 %s22, %s29
    %p31 = scmp.eq.s32.totalorder %s30, 0
    %s33 = sadd.s32 %s32, 1
    %s34 = scalar_select %p31, %s32, %s33
    %p37 = pneg %p31
    %p38 = scmp.eq.s32.totalorder %s22, 1
    %p39 = por %p37, %p38
    %p40 = scmp.ne.s32.totalorder %s32, %s35
    %p41 = scmp.eq.s32.totalorder %s22, 0
    %p42 = por %p40, %p41
    %p43 = scmp.ne.s32.totalorder %s32, %s35
    %p44 = scmp.eq.s32.totalorder %s27, 1
    %p45 = por %p43, %p44
    %p46 = scmp.ne.s32.totalorder %s35, %s36
    %p47 = scmp.eq.s32.totalorder %s27, 0
    %p48 = por %p46, %p47
    %p49 = scmp.ne.s32.totalorder %s35, %s36
    %p50 = scmp.eq.s32.totalorder %s28, 1
    %p51 = por %p49, %p50
    %p53 = scmp.ne.s32.totalorder %s36, %s52
    %p54 = scmp.eq.s32.totalorder %s28, 0
    %p55 = por %p53, %p54
    %s56 = ssub.s32 %s22, %s29
    %p57 = scmp.eq.s32.totalorder %s56, 0
    %s59 = sadd.s32 %s58, 1
    %s60 = scalar_select %p57, %s58, %s59
    %p63 = pneg %p57
    %p64 = scmp.eq.s32.totalorder %s22, 1
    %p65 = por %p63, %p64
    %p66 = scmp.ne.s32.totalorder %s58, %s61
    %p67 = scmp.eq.s32.totalorder %s22, 0
    %p68 = por %p66, %p67
    %p69 = scmp.ne.s32.totalorder %s58, %s61
    %p70 = scmp.eq.s32.totalorder %s27, 1
    %p71 = por %p69, %p70
    %p72 = scmp.ne.s32.totalorder %s61, %s62
    %p73 = scmp.eq.s32.totalorder %s27, 0
    %p74 = por %p72, %p73
    %p75 = scmp.ne.s32.totalorder %s61, %s62
    %p76 = scmp.eq.s32.totalorder %s28, 1
    %p77 = por %p75, %p76
    %p79 = scmp.ne.s32.totalorder %s62, %s78
    %p80 = scmp.eq.s32.totalorder %s28, 0
    %p81 = por %p79, %p80
    %s82 = ssub.s32 %s22, %s29
    %p83 = scmp.eq.s32.totalorder %s82, 0
    %s85 = sadd.s32 %s84, 1
    %s86 = scalar_select %p83, %s84, %s85
    %p89 = pneg %p83
    %p90 = scmp.eq.s32.totalorder %s22, 1
    %p91 = por %p89, %p90
    %p92 = scmp.ne.s32.totalorder %s84, %s87
    %p93 = scmp.eq.s32.totalorder %s22, 0
    %p94 = por %p92, %p93
    %p95 = scmp.ne.s32.totalorder %s84, %s87
    %p96 = scmp.eq.s32.totalorder %s27, 1
    %p97 = por %p95, %p96
    %p98 = scmp.ne.s32.totalorder %s87, %s88
    %p99 = scmp.eq.s32.totalorder %s27, 0
    %p100 = por %p98, %p99
    %p101 = scmp.ne.s32.totalorder %s87, %s88
    %p102 = scmp.eq.s32.totalorder %s28, 1
    %p103 = por %p101, %p102
    %p105 = scmp.ne.s32.totalorder %s88, %s104
    %p106 = scmp.eq.s32.totalorder %s28, 0
    %p107 = por %p105, %p106
    %s108 = ssub.s32 %s22, %s29
    %p109 = scmp.eq.s32.totalorder %s108, 0
    %s111 = sadd.s32 %s110, 1
    %s112 = scalar_select %p109, %s110, %s111
    %p115 = pneg %p109
    %p116 = scmp.eq.s32.totalorder %s22, 1
    %p117 = por %p115, %p116
    %p118 = scmp.ne.s32.totalorder %s110, %s113
    %p119 = scmp.eq.s32.totalorder %s22, 0
    %p120 = por %p118, %p119
    %p121 = scmp.ne.s32.totalorder %s110, %s113
    %p122 = scmp.eq.s32.totalorder %s27, 1
    %p123 = por %p121, %p122
    %p124 = scmp.ne.s32.totalorder %s113, %s114
    %p125 = scmp.eq.s32.totalorder %s27, 0
    %p126 = por %p124, %p125
    %p127 = scmp.ne.s32.totalorder %s113, %s114
    %p128 = scmp.eq.s32.totalorder %s28, 1
    %p129 = por %p127, %p128
    %p131 = scmp.ne.s32.totalorder %s114, %s130
    %p132 = scmp.eq.s32.totalorder %s28, 0
    %p133 = por %p131, %p132
    %s135 = sadd.s32 %s134, 1
    %p138 = scmp.eq.s32.totalorder %s22, 1
    %p139 = scmp.ne.s32.totalorder %s134, %s136
    %p140 = scmp.eq.s32.totalorder %s22, 0
    %p141 = por %p139, %p140
    %p142 = scmp.ne.s32.totalorder %s134, %s136
    %p143 = scmp.eq.s32.totalorder %s27, 1
    %p144 = por %p142, %p143
    %p145 = scmp.ne.s32.totalorder %s136, %s137
    %p146 = scmp.eq.s32.totalorder %s27, 0
    %p147 = por %p145, %p146
    %p148 = scmp.ne.s32.totalorder %s136, %s137
    %p149 = scmp.eq.s32.totalorder %s28, 1
    %p150 = por %p148, %p149
    %p152 = scmp.ne.s32.totalorder %s137, %s151
    %p153 = scmp.eq.s32.totalorder %s28, 0
    %p154 = por %p152, %p153
    %s156 = sadd.s32 %s155, 1
    %p159 = scmp.eq.s32.totalorder %s22, 1
    %p160 = scmp.ne.s32.totalorder %s155, %s157
    %p161 = scmp.eq.s32.totalorder %s22, 0
    %p162 = por %p160, %p161
    %p163 = scmp.ne.s32.totalorder %s155, %s157
    %p164 = scmp.eq.s32.totalorder %s27, 1
    %p165 = por %p163, %p164
    %p166 = scmp.ne.s32.totalorder %s157, %s158
    %p167 = scmp.eq.s32.totalorder %s27, 0
    %p168 = por %p166, %p167
    %p169 = scmp.ne.s32.totalorder %s157, %s158
    %p170 = scmp.eq.s32.totalorder %s28, 1
    %p171 = por %p169, %p170
    %p173 = scmp.ne.s32.totalorder %s158, %s172
    %p174 = scmp.eq.s32.totalorder %s28, 0
    %p175 = por %p173, %p174
    %s177 = sadd.s32 %s176, 1
    %p180 = scmp.eq.s32.totalorder %s22, 1
    %p181 = scmp.ne.s32.totalorder %s176, %s178
    %p182 = scmp.eq.s32.totalorder %s22, 0
    %p183 = por %p181, %p182
    %p184 = scmp.ne.s32.totalorder %s176, %s178
    %p185 = scmp.eq.s32.totalorder %s27, 1
    %p186 = por %p184, %p185
    %p187 = scmp.ne.s32.totalorder %s178, %s179
    %p188 = scmp.eq.s32.totalorder %s27, 0
    %p189 = por %p187, %p188
    %p190 = scmp.ne.s32.totalorder %s178, %s179
    %p191 = scmp.eq.s32.totalorder %s28, 1
    %p192 = por %p190, %p191
    %p194 = scmp.ne.s32.totalorder %s179, %s193
    %p195 = scmp.eq.s32.totalorder %s28, 0
    %p196 = por %p194, %p195
    %s198 = sadd.s32 %s197, 1
    %p201 = scmp.eq.s32.totalorder %s22, 1
    %p202 = scmp.ne.s32.totalorder %s197, %s199
    %p203 = scmp.eq.s32.totalorder %s22, 0
    %p204 = por %p202, %p203
    %p205 = scmp.ne.s32.totalorder %s197, %s199
    %p206 = scmp.eq.s32.totalorder %s27, 1
    %p207 = por %p205, %p206
    %p208 = scmp.ne.s32.totalorder %s199, %s200
    %p209 = scmp.eq.s32.totalorder %s27, 0
    %p210 = por %p208, %p209
    %p211 = scmp.ne.s32.totalorder %s199, %s200
    %p212 = scmp.eq.s32.totalorder %s28, 1
    %p213 = por %p211, %p212
    %p215 = scmp.ne.s32.totalorder %s200, %s214
    %p216 = scmp.eq.s32.totalorder %s28, 0
    %p217 = por %p215, %p216
    %s219 = sadd.s32 %s218, 1
    %p222 = scmp.eq.s32.totalorder %s22, 1
    %p223 = scmp.ne.s32.totalorder %s218, %s220
    %p224 = scmp.eq.s32.totalorder %s22, 0
    %p225 = por %p223, %p224
    %p226 = scmp.ne.s32.totalorder %s218, %s220
    %p227 = scmp.eq.s32.totalorder %s27, 1
    %p228 = por %p226, %p227
    %p229 = scmp.ne.s32.totalorder %s220, %s221
    %p230 = scmp.eq.s32.totalorder %s27, 0
    %p231 = por %p229, %p230
    %p232 = scmp.ne.s32.totalorder %s220, %s221
    %p233 = scmp.eq.s32.totalorder %s28, 1
    %p234 = por %p232, %p233
    %p236 = scmp.ne.s32.totalorder %s221, %s235
    %p237 = scmp.eq.s32.totalorder %s28, 0
    %p238 = por %p236, %p237
    %s240 = sadd.s32 %s239, 1
    %p243 = scmp.eq.s32.totalorder %s22, 1
    %p244 = scmp.ne.s32.totalorder %s239, %s241
    %p245 = scmp.eq.s32.totalorder %s22, 0
    %p246 = por %p244, %p245
    %p247 = scmp.ne.s32.totalorder %s239, %s241
    %p248 = scmp.eq.s32.totalorder %s27, 1
    %p249 = por %p247, %p248
    %p250 = scmp.ne.s32.totalorder %s241, %s242
    %p251 = scmp.eq.s32.totalorder %s27, 0
    %p252 = por %p250, %p251
    %p253 = scmp.ne.s32.totalorder %s241, %s242
    %p254 = scmp.eq.s32.totalorder %s28, 1
    %p255 = por %p253, %p254
    %p257 = scmp.ne.s32.totalorder %s242, %s256
    %p258 = scmp.eq.s32.totalorder %s28, 0
    %p259 = por %p257, %p258
    %s261 = sadd.s32 %s260, 1
    %p264 = scmp.eq.s32.totalorder %s22, 1
    %p265 = scmp.ne.s32.totalorder %s260, %s262
    %p266 = scmp.eq.s32.totalorder %s22, 0
    %p267 = por %p265, %p266
    %p268 = scmp.ne.s32.totalorder %s260, %s262
    %p269 = scmp.eq.s32.totalorder %s27, 1
    %p270 = por %p268, %p269
    %p271 = scmp.ne.s32.totalorder %s262, %s263
    %p272 = scmp.eq.s32.totalorder %s27, 0
    %p273 = por %p271, %p272
    %p274 = scmp.ne.s32.totalorder %s262, %s263
    %p275 = scmp.eq.s32.totalorder %s28, 1
    %p276 = por %p274, %p275
    %p278 = scmp.ne.s32.totalorder %s263, %s277
    %p279 = scmp.eq.s32.totalorder %s28, 0
    %p280 = por %p278, %p279
    %s282 = sadd.s32 %s281, 1
    %p285 = scmp.eq.s32.totalorder %s22, 1
    %p286 = scmp.ne.s32.totalorder %s281, %s283
    %p287 = scmp.eq.s32.totalorder %s22, 0
    %p288 = por %p286, %p287
    %p289 = scmp.ne.s32.totalorder %s281, %s283
    %p290 = scmp.eq.s32.totalorder %s27, 1
    %p291 = por %p289, %p290
    %p292 = scmp.ne.s32.totalorder %s283, %s284
    %p293 = scmp.eq.s32.totalorder %s27, 0
    %p294 = por %p292, %p293
    %p295 = scmp.ne.s32.totalorder %s283, %s284
    %p296 = scmp.eq.s32.totalorder %s28, 1
    %p297 = por %p295, %p296
    %p299 = scmp.ne.s32.totalorder %s284, %s298
    %p300 = scmp.eq.s32.totalorder %s28, 0
    %p301 = por %p299, %p300
    %s303 = sadd.s32 %s302, 1
    %p306 = scmp.eq.s32.totalorder %s22, 1
    %p307 = scmp.ne.s32.totalorder %s302, %s304
    %p308 = scmp.eq.s32.totalorder %s22, 0
    %p309 = por %p307, %p308
    %p310 = scmp.ne.s32.totalorder %s302, %s304
    %p311 = scmp.eq.s32.totalorder %s27, 1
    %p312 = por %p310, %p311
    %p313 = scmp.ne.s32.totalorder %s304, %s305
    %p314 = scmp.eq.s32.totalorder %s27, 0
    %p315 = por %p313, %p314
    %p316 = scmp.ne.s32.totalorder %s304, %s305
    %p317 = scmp.eq.s32.totalorder %s28, 1
    %p318 = por %p316, %p317
    %p320 = scmp.ne.s32.totalorder %s305, %s319
    %p321 = scmp.eq.s32.totalorder %s28, 0
    %p322 = por %p320, %p321
    %s324 = sadd.s32 %s323, 1
    %p327 = scmp.eq.s32.totalorder %s22, 1
    %p328 = scmp.ne.s32.totalorder %s323, %s325
    %p329 = scmp.eq.s32.totalorder %s22, 0
    %p330 = por %p328, %p329
    %p331 = scmp.ne.s32.totalorder %s323, %s325
    %p332 = scmp.eq.s32.totalorder %s27, 1
    %p333 = por %p331, %p332
    %p334 = scmp.ne.s32.totalorder %s325, %s326
    %p335 = scmp.eq.s32.totalorder %s27, 0
    %p336 = por %p334, %p335
    %p337 = scmp.ne.s32.totalorder %s325, %s326
    %p338 = scmp.eq.s32.totalorder %s28, 1
    %p339 = por %p337, %p338
    %p341 = scmp.ne.s32.totalorder %s326, %s340
    %p342 = scmp.eq.s32.totalorder %s28, 0
    %p343 = por %p341, %p342
    %s345 = sadd.s32 %s344, 1
    %p348 = scmp.eq.s32.totalorder %s22, 1
    %p349 = scmp.ne.s32.totalorder %s344, %s346
    %p350 = scmp.eq.s32.totalorder %s22, 0
    %p351 = por %p349, %p350
    %p352 = scmp.ne.s32.totalorder %s344, %s346
    %p353 = scmp.eq.s32.totalorder %s27, 1
    %p354 = por %p352, %p353
    %p355 = scmp.ne.s32.totalorder %s346, %s347
    %p356 = scmp.eq.s32.totalorder %s27, 0
    %p357 = por %p355, %p356
    %p358 = scmp.ne.s32.totalorder %s346, %s347
    %p359 = scmp.eq.s32.totalorder %s28, 1
    %p360 = por %p358, %p359
    %p362 = scmp.ne.s32.totalorder %s347, %s361
    %p363 = scmp.eq.s32.totalorder %s28, 0
    %p364 = por %p362, %p363
    %s366 = sadd.s32 %s365, 1
    %p369 = scmp.eq.s32.totalorder %s22, 1
    %p370 = scmp.ne.s32.totalorder %s365, %s367
    %p371 = scmp.eq.s32.totalorder %s22, 0
    %p372 = por %p370, %p371
    %p373 = scmp.ne.s32.totalorder %s365, %s367
    %p374 = scmp.eq.s32.totalorder %s27, 1
    %p375 = por %p373, %p374
    %p376 = scmp.ne.s32.totalorder %s367, %s368
    %p377 = scmp.eq.s32.totalorder %s27, 0
    %p378 = por %p376, %p377
    %p379 = scmp.ne.s32.totalorder %s367, %s368
    %p380 = scmp.eq.s32.totalorder %s28, 1
    %p381 = por %p379, %p380
    %p383 = scmp.ne.s32.totalorder %s368, %s382
    %p384 = scmp.eq.s32.totalorder %s28, 0
    %p385 = por %p383, %p384
    %s386 = ssub.s32 %s22, %s29
    %p387 = scmp.eq.s32.totalorder %s386, 0
    %s389 = sadd.s32 %s388, 1
    %s390 = scalar_select %p387, %s388, %s389
    %p393 = pneg %p387
    %p394 = scmp.eq.s32.totalorder %s22, 1
    %p395 = por %p393, %p394
    %p396 = scmp.ne.s32.totalorder %s388, %s391
    %p397 = scmp.eq.s32.totalorder %s22, 0
    %p398 = por %p396, %p397
    %p399 = scmp.ne.s32.totalorder %s388, %s391
    %p400 = scmp.eq.s32.totalorder %s27, 1
    %p401 = por %p399, %p400
    %p402 = scmp.ne.s32.totalorder %s391, %s392
    %p403 = scmp.eq.s32.totalorder %s27, 0
    %p404 = por %p402, %p403
    %p405 = scmp.ne.s32.totalorder %s391, %s392
    %p406 = scmp.eq.s32.totalorder %s28, 1
    %p407 = por %p405, %p406
    %p409 = scmp.ne.s32.totalorder %s392, %s408
    %p410 = scmp.eq.s32.totalorder %s28, 0
    %p411 = por %p409, %p410
    %p412 = scmp.le.s32.totalorder 1, %s22
    %p413 = scmp.lt.s32.totalorder %s22, 3
    %p414 = pnand %p412, %p413
    %p415 = pneg %p414
    // Predicated region
    $region9: #{generator_forward.1} parent=5 // pred_check
      _
    $region10: #{generator_forward.1} parent=5 // pred_check_branch
      %417 = sbr.rel (%p414) target = $region12
    $region11: #{generator_forward.1} parent=5 // pred_region
      %s418 = ssub.s32 %s22, 1
      // Predicated region
      $region13: #{generator_forward.1} parent=11 // pred_check
        %p419 = pneg %p147
      $region14: #{generator_forward.1} parent=11 // pred_check_branch
        %421 = sbr.rel (%p419) target = $region16
      $region15: #{generator_forward.1} parent=11 // pred_region
        _
      $region16: #{generator_forward.1} parent=11 // pred_fallthru
        _
      // Predicated region
      $region17: #{generator_forward.1} parent=11 // pred_check
        %p422 = pneg %p168
      $region18: #{generator_forward.1} parent=11 // pred_check_branch
        %424 = sbr.rel (%p422) target = $region20
      $region19: #{generator_forward.1} parent=11 // pred_region
        _
      $region20: #{generator_forward.1} parent=11 // pred_fallthru
        _
      // Predicated region
      $region21: #{generator_forward.1} parent=11 // pred_check
        %p425 = pneg %p189
      $region22: #{generator_forward.1} parent=11 // pred_check_branch
        %427 = sbr.rel (%p425) target = $region24
      $region23: #{generator_forward.1} parent=11 // pred_region
        _
      $region24: #{generator_forward.1} parent=11 // pred_fallthru
        _
      // Predicated region
      $region25: #{generator_forward.1} parent=11 // pred_check
        %p428 = pneg %p210
      $region26: #{generator_forward.1} parent=11 // pred_check_branch
        %430 = sbr.rel (%p428) target = $region28
      $region27: #{generator_forward.1} parent=11 // pred_region
        _
      $region28: #{generator_forward.1} parent=11 // pred_fallthru
        _
      // Predicated region
      $region29: #{generator_forward.1} parent=11 // pred_check
        %p431 = pneg %p231
      $region30: #{generator_forward.1} parent=11 // pred_check_branch
        %433 = sbr.rel (%p431) target = $region32
      $region31: #{generator_forward.1} parent=11 // pred_region
        _
      $region32: #{generator_forward.1} parent=11 // pred_fallthru
        _
      // Predicated region
      $region33: #{generator_forward.1} parent=11 // pred_check
        %p434 = pneg %p252
      $region34: #{generator_forward.1} parent=11 // pred_check_branch
        %436 = sbr.rel (%p434) target = $region36
      $region35: #{generator_forward.1} parent=11 // pred_region
        _
      $region36: #{generator_forward.1} parent=11 // pred_fallthru
        _
      // Predicated region
      $region37: #{generator_forward.1} parent=11 // pred_check
        %p437 = pneg %p273
      $region38: #{generator_forward.1} parent=11 // pred_check_branch
        %439 = sbr.rel (%p437) target = $region40
      $region39: #{generator_forward.1} parent=11 // pred_region
        _
      $region40: #{generator_forward.1} parent=11 // pred_fallthru
        _
      // Predicated region
      $region41: #{generator_forward.1} parent=11 // pred_check
        %p440 = pneg %p294
      $region42: #{generator_forward.1} parent=11 // pred_check_branch
        %442 = sbr.rel (%p440) target = $region44
      $region43: #{generator_forward.1} parent=11 // pred_region
        _
      $region44: #{generator_forward.1} parent=11 // pred_fallthru
        _
      // Predicated region
      $region45: #{generator_forward.1} parent=11 // pred_check
        %p443 = pneg %p315
      $region46: #{generator_forward.1} parent=11 // pred_check_branch
        %445 = sbr.rel (%p443) target = $region48
      $region47: #{generator_forward.1} parent=11 // pred_region
        _
      $region48: #{generator_forward.1} parent=11 // pred_fallthru
        _
      // Predicated region
      $region49: #{generator_forward.1} parent=11 // pred_check
        %p446 = pneg %p336
      $region50: #{generator_forward.1} parent=11 // pred_check_branch
        %448 = sbr.rel (%p446) target = $region52
      $region51: #{generator_forward.1} parent=11 // pred_region
        _
      $region52: #{generator_forward.1} parent=11 // pred_fallthru
        _
      // Predicated region
      $region53: #{generator_forward.1} parent=11 // pred_check
        %p449 = pneg %p357
      $region54: #{generator_forward.1} parent=11 // pred_check_branch
        %451 = sbr.rel (%p449) target = $region56
      $region55: #{generator_forward.1} parent=11 // pred_region
        _
      $region56: #{generator_forward.1} parent=11 // pred_fallthru
        _
      // Predicated region
      $region57: #{generator_forward.1} parent=11 // pred_check
        %p452 = pneg %p378
      $region58: #{generator_forward.1} parent=11 // pred_check_branch
        %454 = sbr.rel (%p452) target = $region60
      $region59: #{generator_forward.1} parent=11 // pred_region
        _
      $region60: #{generator_forward.1} parent=11 // pred_fallthru
        _
    $region12: #{generator_forward.1} parent=5 // pred_fallthru
      _
    %p455 = scmp.lt.s32.totalorder %s22, 2
    // Predicated region
    $region61: #{generator_forward.1} parent=5 // pred_check
      %p456 = pneg %p455
    $region62: #{generator_forward.1} parent=5 // pred_check_branch
      %458 = sbr.rel (%p456) target = $region64
    $region63: #{generator_forward.1} parent=5 // pred_region
      // Predicated region
      $region65: #{generator_forward.1} parent=63 // pred_check
        %p459 = pneg %p42
      $region66: #{generator_forward.1} parent=63 // pred_check_branch
        %461 = sbr.rel (%p459) target = $region68
      $region67: #{generator_forward.1} parent=63 // pred_region
        %p462 = scmp.lt.s32.totalorder %s22, 1
        %s463 = scalar_select %p462, %s22, 1
        %s464 = smul.addr %s463, 8
        %s465 = scalar_lea.vmem %s0, %s464
      $region68: #{generator_forward.1} parent=63 // pred_fallthru
        _
      // Predicated region
      $region69: #{generator_forward.1} parent=63 // pred_check
        %p466 = pneg %p68
      $region70: #{generator_forward.1} parent=63 // pred_check_branch
        %468 = sbr.rel (%p466) target = $region72
      $region71: #{generator_forward.1} parent=63 // pred_region
        %p469 = scmp.lt.s32.totalorder %s22, 1
        %s470 = scalar_select %p469, %s22, 1
        %s471 = smul.addr %s470, 8
        %s472 = scalar_lea.vmem %s1, %s471
      $region72: #{generator_forward.1} parent=63 // pred_fallthru
        _
      // Predicated region
      $region73: #{generator_forward.1} parent=63 // pred_check
        %p473 = pneg %p94
      $region74: #{generator_forward.1} parent=63 // pred_check_branch
        %475 = sbr.rel (%p473) target = $region76
      $region75: #{generator_forward.1} parent=63 // pred_region
        %p476 = scmp.lt.s32.totalorder %s22, 1
        %s477 = scalar_select %p476, %s22, 1
        %s478 = smul.addr %s477, 8
        %s479 = scalar_lea.vmem %s2, %s478
      $region76: #{generator_forward.1} parent=63 // pred_fallthru
        _
      // Predicated region
      $region77: #{generator_forward.1} parent=63 // pred_check
        %p480 = pneg %p120
      $region78: #{generator_forward.1} parent=63 // pred_check_branch
        %482 = sbr.rel (%p480) target = $region80
      $region79: #{generator_forward.1} parent=63 // pred_region
        %p483 = scmp.lt.s32.totalorder %s22, 1
        %s484 = scalar_select %p483, %s22, 1
        %s485 = smul.addr %s484, 8
        %s486 = scalar_lea.vmem %s3, %s485
      $region80: #{generator_forward.1} parent=63 // pred_fallthru
        _
    $region64: #{generator_forward.1} parent=5 // pred_fallthru
      _
    %p487 = scmp.le.s32.totalorder 1, %s22
    %p488 = scmp.lt.s32.totalorder %s22, 3
    %p489 = pnand %p487, %p488
    %p490 = pneg %p489
    // Predicated region
    $region81: #{generator_forward.1} parent=5 // pred_check
      _
    $region82: #{generator_forward.1} parent=5 // pred_check_branch
      %492 = sbr.rel (%p489) target = $region84
    $region83: #{generator_forward.1} parent=5 // pred_region
      %s493 = ssub.s32 %s22, 1
      %p494 = scmp.lt.s32.totalorder %s27, 1
      %s495 = scalar_select %p494, %s27, 1
      %s496 = smul.addr %s495, 8
      %s497 = scalar_lea.vmem %s0, %s496
      %p498 = pneg %p48
      %p499 = pneg %p45
      %p500 = scmp.lt.s32.totalorder %s27, 1
      %s501 = scalar_select %p500, %s27, 1
      %s502 = smul.addr %s501, 8
      %s503 = scalar_lea.vmem %s1, %s502
      %p504 = pneg %p74
      %p505 = pneg %p71
      %p506 = scmp.lt.s32.totalorder %s27, 1
      %s507 = scalar_select %p506, %s27, 1
      %s508 = smul.addr %s507, 8
      %s509 = scalar_lea.vmem %s2, %s508
      %p510 = pneg %p100
      %p511 = pneg %p97
      %p512 = scmp.lt.s32.totalorder %s27, 1
      %s513 = scalar_select %p512, %s27, 1
      %s514 = smul.addr %s513, 8
      %s515 = scalar_lea.vmem %s3, %s514
      %p516 = pneg %p126
      %p517 = pneg %p123
      %p518 = pneg %p147
      %p519 = pneg %p144
      %p520 = pneg %p168
      %p521 = pneg %p165
      %p522 = pneg %p189
      %p523 = pneg %p186
      %p524 = pneg %p210
      %p525 = pneg %p207
      %p526 = pneg %p231
      %p527 = pneg %p228
      %p528 = pneg %p252
      %p529 = pneg %p249
      %p530 = pneg %p273
      %p531 = pneg %p270
      %p532 = pneg %p294
      %p533 = pneg %p291
      %p534 = pneg %p315
      %p535 = pneg %p312
      %p536 = pneg %p336
      %p537 = pneg %p333
      %p538 = pneg %p357
      %p539 = pneg %p354
      %p540 = pneg %p378
      %p541 = pneg %p375
      %p542 = pneg %p404
      %p543 = pneg %p401
      %p544 = scmp.lt.s32.totalorder %s27, 1
      %s545 = scalar_select %p544, %s27, 1
      %s546 = smul.addr %s545, 4
      %s547 = smul.addr %s546, 8
      %s548 = scalar_lea.vmem %s16, %s547
      %p549 = scmp.lt.s32.totalorder %s27, 1
      %s550 = scalar_select %p549, %s27, 1
      %s551 = smul.addr %s550, 8
      %s552 = scalar_lea.vmem %s0, %s551
      %p553 = scmp.lt.s32.totalorder %s27, 1
      %s554 = scalar_select %p553, %s27, 1
      %s555 = smul.addr %s554, 8
      %s556 = scalar_lea.vmem %s1, %s555
      %p557 = scmp.lt.s32.totalorder %s27, 1
      %s558 = scalar_select %p557, %s27, 1
      %s559 = smul.addr %s558, 8
      %s560 = scalar_lea.vmem %s2, %s559
      %p561 = scmp.lt.s32.totalorder %s27, 1
      %s562 = scalar_select %p561, %s27, 1
      %s563 = smul.addr %s562, 8
      %s564 = scalar_lea.vmem %s3, %s563
      %p565 = scmp.lt.s32.totalorder %s27, 1
      %s566 = scalar_select %p565, %s27, 1
      %s567 = smul.addr %s566, 4
      %s568 = smul.addr %s567, 8
      %s569 = scalar_lea.vmem %s16, %s568
      %v570 = vld [vmem:[%s556] sm:$0xff]
      %v571 = vld [vmem:[%s4] sm:$0xff]
      %v572 = vld [vmem:[%s4 + $0x8] sm:$0xff]
      %v573 = vld [vmem:[%s4 + $0x10] sm:$0xff]
      %v574 = vld [vmem:[%s4 + $0x18] sm:$0xff]
      %v575 = vld [vmem:[%s5] sm:$0x1]
      %v577 = vlaneseq
      %v578 = vshrl.u32 %v577, 7
      %v579 = vsub.s32 0, %v578
      %v580 = vrot.slane %v575, %v579
      %vm582 = vcmask 261120
      %v584 = vsel %vm582, %v570, 0
      %586 = vmatprep.subr.mxu0 0.0
      %587 = vmatpush1.msra.mxu0 %v571
      %588 = vmatprep.subr.mxu0 0.0
      %589 = vmatpush1.msra.mxu0 %v572
      %590 = vmatprep.subr.mxu0 0.0
      %591 = vmatpush1.msra.mxu0 %v573
      %592 = vmatprep.subr.mxu0 0.0
      %593 = vmatpush1.msra.mxu0 %v574
      %594 = vmatprep.subr.mxu0 0.0
      %595 = vmatpush1.msra.mxu0 0.0
      %596 = vmatprep.subr.mxu0 0.0
      %597 = vmatpush1.msra.mxu0 0.0
      %598 = vmatprep.subr.mxu0 0.0
      %599 = vmatpush1.msra.mxu0 0.0
      %600 = vmatprep.subr.mxu0 0.0
      %601 = vmatpush1.msra.mxu0 0.0
      %602 = vmatprep.subr.mxu0 0.0
      %603 = vmatpush1.msra.mxu0 0.0
      %604 = vmatprep.subr.mxu0 0.0
      %605 = vmatpush1.msra.mxu0 0.0
      %606 = vmatprep.subr.mxu0 0.0
      %607 = vmatpush1.msra.mxu0 0.0
      %608 = vmatprep.subr.mxu0 0.0
      %609 = vmatpush1.msra.mxu0 0.0
      %610 = vmatprep.subr.mxu0 0.0
      %611 = vmatpush1.msra.mxu0 0.0
      %612 = vmatprep.subr.mxu0 0.0
      %613 = vmatpush1.msra.mxu0 0.0
      %614 = vmatprep.subr.mxu0 0.0
      %615 = vmatpush1.msra.mxu0 0.0
      %616 = vmatprep.subr.mxu0 0.0
      %617 = vmatpush1.msra.mxu0 0.0
      %618 = vmatprep.subr.mxu0 0.0
      %619 = vmatpush1.msra.mxu0 0.0
      %620 = vmatprep.subr.mxu0 0.0
      %621 = vmatpush1.msra.mxu0 0.0
      %622 = vmatprep.subr.mxu0 0.0
      %623 = vmatpush1.msra.mxu0 0.0
      %624 = vmatprep.subr.mxu0 0.0
      %625 = vmatpush1.msra.mxu0 0.0
      %626 = vmatprep.subr.mxu0 0.0
      %627 = vmatpush1.msra.mxu0 0.0
      %628 = vmatprep.subr.mxu0 0.0
      %629 = vmatpush1.msra.mxu0 0.0
      %630 = vmatprep.subr.mxu0 0.0
      %631 = vmatpush1.msra.mxu0 0.0
      %632 = vmatprep.subr.mxu0 0.0
      %633 = vmatpush1.msra.mxu0 0.0
      %634 = vmatprep.subr.mxu0 0.0
      %635 = vmatpush1.msra.mxu0 0.0
      %636 = vmatprep.subr.mxu0 0.0
      %637 = vmatpush1.msra.mxu0 0.0
      %638 = vmatprep.subr.mxu0 0.0
      %639 = vmatpush1.msra.mxu0 0.0
      %640 = vmatprep.subr.mxu0 0.0
      %641 = vmatpush1.msra.mxu0 0.0
      %642 = vmatprep.subr.mxu0 0.0
      %643 = vmatpush1.msra.mxu0 0.0
      %644 = vmatprep.subr.mxu0 0.0
      %645 = vmatpush1.msra.mxu0 0.0
      %646 = vmatprep.subr.mxu0 0.0
      %647 = vmatpush1.msra.mxu0 0.0
      %648 = vmatprep.subr.mxu0 0.0
      %649 = vmatpush1.msra.mxu0 0.0
      %650 = vmatprep.mubr.f32.mxu0 0.0
      %651 = vmatmul.mubr.f32.gmra.mrb[0].mxu0 %v584
      %v652 = vpop.f32.mrb[0].mxu0
      %v653 = vadd.f32 %v580, %v652
      %v654 = vpop.f32.mrb[0].mxu0
      %655 = vdwg.mxu0
      %v656 = vmax.f32 %v653, 0.0
      %v657 = vld [vmem:[%s6] sm:$0xff]
      %v658 = vld [vmem:[%s6 + $0x8] sm:$0xff]
      %v659 = vld [vmem:[%s6 + $0x10] sm:$0xff]
      %v660 = vld [vmem:[%s6 + $0x18] sm:$0xff]
      %v661 = vld [vmem:[%s6 + $0x20] sm:$0xff]
      %v662 = vld [vmem:[%s6 + $0x28] sm:$0xff]
      %v663 = vld [vmem:[%s6 + $0x30] sm:$0xff]
      %v664 = vld [vmem:[%s6 + $0x38] sm:$0xff]
      %v665 = vld [vmem:[%s7] sm:$0x1]
      %v667 = vlaneseq
      %v668 = vshrl.u32 %v667, 7
      %v669 = vsub.s32 0, %v668
      %v670 = vrot.slane %v665, %v669
      %vm672 = vcmask 523264
      %v674 = vsel %vm672, %v656, 0
      %676 = vmatprep.subr.mxu0 0.0
      %677 = vmatpush1.msra.mxu0 %v657
      %678 = vmatprep.subr.mxu0 0.0
      %679 = vmatpush1.msra.mxu0 %v658
      %680 = vmatprep.subr.mxu0 0.0
      %681 = vmatpush1.msra.mxu0 %v659
      %682 = vmatprep.subr.mxu0 0.0
      %683 = vmatpush1.msra.mxu0 %v660
      %684 = vmatprep.subr.mxu0 0.0
      %685 = vmatpush1.msra.mxu0 %v661
      %686 = vmatprep.subr.mxu0 0.0
      %687 = vmatpush1.msra.mxu0 %v662
      %688 = vmatprep.subr.mxu0 0.0
      %689 = vmatpush1.msra.mxu0 %v663
      %690 = vmatprep.subr.mxu0 0.0
      %691 = vmatpush1.msra.mxu0 %v664
      %692 = vmatprep.subr.mxu0 0.0
      %693 = vmatpush1.msra.mxu0 0.0
      %694 = vmatprep.subr.mxu0 0.0
      %695 = vmatpush1.msra.mxu0 0.0
      %696 = vmatprep.subr.mxu0 0.0
      %697 = vmatpush1.msra.mxu0 0.0
      %698 = vmatprep.subr.mxu0 0.0
      %699 = vmatpush1.msra.mxu0 0.0
      %700 = vmatprep.subr.mxu0 0.0
      %701 = vmatpush1.msra.mxu0 0.0
      %702 = vmatprep.subr.mxu0 0.0
      %703 = vmatpush1.msra.mxu0 0.0
      %704 = vmatprep.subr.mxu0 0.0
      %705 = vmatpush1.msra.mxu0 0.0
      %706 = vmatprep.subr.mxu0 0.0
      %707 = vmatpush1.msra.mxu0 0.0
      %708 = vmatprep.subr.mxu0 0.0
      %709 = vmatpush1.msra.mxu0 0.0
      %710 = vmatprep.subr.mxu0 0.0
      %711 = vmatpush1.msra.mxu0 0.0
      %712 = vmatprep.subr.mxu0 0.0
      %713 = vmatpush1.msra.mxu0 0.0
      %714 = vmatprep.subr.mxu0 0.0
      %715 = vmatpush1.msra.mxu0 0.0
      %716 = vmatprep.subr.mxu0 0.0
      %717 = vmatpush1.msra.mxu0 0.0
      %718 = vmatprep.subr.mxu0 0.0
      %719 = vmatpush1.msra.mxu0 0.0
      %720 = vmatprep.subr.mxu0 0.0
      %721 = vmatpush1.msra.mxu0 0.0
      %722 = vmatprep.subr.mxu0 0.0
      %723 = vmatpush1.msra.mxu0 0.0
      %724 = vmatprep.subr.mxu0 0.0
      %725 = vmatpush1.msra.mxu0 0.0
      %726 = vmatprep.subr.mxu0 0.0
      %727 = vmatpush1.msra.mxu0 0.0
      %728 = vmatprep.subr.mxu0 0.0
      %729 = vmatpush1.msra.mxu0 0.0
      %730 = vmatprep.subr.mxu0 0.0
      %731 = vmatpush1.msra.mxu0 0.0
      %732 = vmatprep.subr.mxu0 0.0
      %733 = vmatpush1.msra.mxu0 0.0
      %734 = vmatprep.subr.mxu0 0.0
      %735 = vmatpush1.msra.mxu0 0.0
      %736 = vmatprep.subr.mxu0 0.0
      %737 = vmatpush1.msra.mxu0 0.0
      %738 = vmatprep.subr.mxu0 0.0
      %739 = vmatpush1.msra.mxu0 0.0
      %740 = vmatprep.mubr.f32.mxu0 0.0
      %741 = vmatmul.mubr.f32.gmra.mrb[0].mxu0 %v674
      %v742 = vpop.f32.mrb[0].mxu0
      %v743 = vadd.f32 %v670, %v742
      %v744 = vpop.f32.mrb[0].mxu0
      %745 = vdwg.mxu0
      %v746 = vld [vmem:[%s8] sm:$0xff]
      %v747 = vld [vmem:[%s8 + $0x8] sm:$0xff]
      %v748 = vld [vmem:[%s8 + $0x10] sm:$0xff]
      %v749 = vld [vmem:[%s8 + $0x18] sm:$0xff]
      %v750 = vld [vmem:[%s8 + $0x20] sm:$0xff]
      %v751 = vld [vmem:[%s8 + $0x28] sm:$0xff]
      %v752 = vld [vmem:[%s8 + $0x30] sm:$0xff]
      %v753 = vld [vmem:[%s8 + $0x38] sm:$0xff]
      %v754 = vld [vmem:[%s9] sm:$0x1]
      %v756 = vlaneseq
      %v757 = vshrl.u32 %v756, 7
      %v758 = vsub.s32 0, %v757
      %v759 = vrot.slane %v754, %v758
      %761 = vmatprep.subr.mxu0 0.0
      %762 = vmatpush1.msra.mxu0 %v746
      %763 = vmatprep.subr.mxu0 0.0
      %764 = vmatpush1.msra.mxu0 %v747
      %765 = vmatprep.subr.mxu0 0.0
      %766 = vmatpush1.msra.mxu0 %v748
      %767 = vmatprep.subr.mxu0 0.0
      %768 = vmatpush1.msra.mxu0 %v749
      %769 = vmatprep.subr.mxu0 0.0
      %770 = vmatpush1.msra.mxu0 %v750
      %771 = vmatprep.subr.mxu0 0.0
      %772 = vmatpush1.msra.mxu0 %v751
      %773 = vmatprep.subr.mxu0 0.0
      %774 = vmatpush1.msra.mxu0 %v752
      %775 = vmatprep.subr.mxu0 0.0
      %776 = vmatpush1.msra.mxu0 %v753
      %777 = vmatprep.subr.mxu0 0.0
      %778 = vmatpush1.msra.mxu0 0.0
      %779 = vmatprep.subr.mxu0 0.0
      %780 = vmatpush1.msra.mxu0 0.0
      %781 = vmatprep.subr.mxu0 0.0
      %782 = vmatpush1.msra.mxu0 0.0
      %783 = vmatprep.subr.mxu0 0.0
      %784 = vmatpush1.msra.mxu0 0.0
      %785 = vmatprep.subr.mxu0 0.0
      %786 = vmatpush1.msra.mxu0 0.0
      %787 = vmatprep.subr.mxu0 0.0
      %788 = vmatpush1.msra.mxu0 0.0
      %789 = vmatprep.subr.mxu0 0.0
      %790 = vmatpush1.msra.mxu0 0.0
      %791 = vmatprep.subr.mxu0 0.0
      %792 = vmatpush1.msra.mxu0 0.0
      %793 = vmatprep.subr.mxu0 0.0
      %794 = vmatpush1.msra.mxu0 0.0
      %795 = vmatprep.subr.mxu0 0.0
      %796 = vmatpush1.msra.mxu0 0.0
      %797 = vmatprep.subr.mxu0 0.0
      %798 = vmatpush1.msra.mxu0 0.0
      %799 = vmatprep.subr.mxu0 0.0
      %800 = vmatpush1.msra.mxu0 0.0
      %801 = vmatprep.subr.mxu0 0.0
      %802 = vmatpush1.msra.mxu0 0.0
      %803 = vmatprep.subr.mxu0 0.0
      %804 = vmatpush1.msra.mxu0 0.0
      %805 = vmatprep.subr.mxu0 0.0
      %806 = vmatpush1.msra.mxu0 0.0
      %807 = vmatprep.subr.mxu0 0.0
      %808 = vmatpush1.msra.mxu0 0.0
      %809 = vmatprep.subr.mxu0 0.0
      %810 = vmatpush1.msra.mxu0 0.0
      %811 = vmatprep.subr.mxu0 0.0
      %812 = vmatpush1.msra.mxu0 0.0
      %813 = vmatprep.subr.mxu0 0.0
      %814 = vmatpush1.msra.mxu0 0.0
      %815 = vmatprep.subr.mxu0 0.0
      %816 = vmatpush1.msra.mxu0 0.0
      %817 = vmatprep.subr.mxu0 0.0
      %818 = vmatpush1.msra.mxu0 0.0
      %819 = vmatprep.subr.mxu0 0.0
      %820 = vmatpush1.msra.mxu0 0.0
      %821 = vmatprep.subr.mxu0 0.0
      %822 = vmatpush1.msra.mxu0 0.0
      %823 = vmatprep.subr.mxu0 0.0
      %824 = vmatpush1.msra.mxu0 0.0
      %825 = vmatprep.mubr.f32.mxu0 0.0
      %826 = vmatmul.mubr.f32.gmra.mrb[0].mxu0 %v674
      %v827 = vpop.f32.mrb[0].mxu0
      %v828 = vadd.f32 %v759, %v827
      %v829 = vpop.f32.mrb[0].mxu0
      %830 = vdwg.mxu0
      %v831 = vld [vmem:[%s560] sm:$0xff]
      %v832 = vld [vmem:[%s564] sm:$0xff]
      %v833 = vmul.f32 %v743, %v831
      %v834 = vmul.f32 %v828, %v832
      %v835 = vadd.f32 %v833, %v834
      %v836 = vand.u32 2147483647, %v835
      %vm837 = vcmp.le.f32.partialorder %v836, 0.7853982
      %vm838 = vcmp.lt.s32.totalorder %v835, 0
      %v839 = vand.u32 %v835, 2139095040
      %v840 = vshrl.u32 %v839, 23
      %v841 = vsub.s32 %v840, 127
      %v842 = vand.u32 2147483647, %v835
      %v843 = vand.u32 %v842, 8388607
      %v844 = vor.u32 %v843, 8388608
      %v845 = vsub.s32 0, %v844
      %v846 = vadd.s32 %v841, 1
      %vm847 = vcmp.gt.s32.totalorder %v846, 0
      %v848 = vsel %vm847, %v846, 0
      %v849 = vshrl.u32 %v848, 5
      %v850 = vand.u32 %v848, 31
      %v851 = vsub.s32 32, %v850
      %v852 = vshrl.u32 683565275, %v851
      %v853 = vshll.u32 683565275, %v850
      %v854 = vshrl.u32 2475754826, %v851
      %v855 = vor.u32 %v853, %v854
      %v856 = vshll.u32 2475754826, %v850
      %v857 = vshrl.u32 2131351028, %v851
      %v858 = vor.u32 %v856, %v857
      %v859 = vshll.u32 2131351028, %v850
      %v860 = vshrl.u32 2102212464, %v851
      %v861 = vor.u32 %v859, %v860
      %v862 = vshll.u32 2102212464, %v850
      %v863 = vshrl.u32 920167782, %v851
      %v864 = vor.u32 %v862, %v863
      %v865 = vshll.u32 920167782, %v850
      %v866 = vshrl.u32 1326507024, %v851
      %v867 = vor.u32 %v865, %v866
      %vm868 = vcmp.lt.s32.totalorder %v849, 1
      %vm869 = vcmp.lt.s32.totalorder %v849, 2
      %vm870 = vcmp.lt.s32.totalorder %v849, 3
      %vm871 = vcmp.lt.s32.totalorder %v849, 4
      %v872 = vsel %vm868, %v852, %v855
      %v873 = vsel %vm871, %v861, 2102212464
      %v874 = vsel %vm870, %v858, %v873
      %v875 = vsel %vm869, %v872, %v874
      %v876 = vsel %vm868, %v855, %v858
      %v877 = vsel %vm871, %v864, 920167782
      %v878 = vsel %vm870, %v861, %v877
      %v879 = vsel %vm869, %v876, %v878
      %v880 = vsel %vm868, %v858, %v861
      %v881 = vsel %vm871, %v867, 1326507024
      %v882 = vsel %vm870, %v864, %v881
      %v883 = vsel %vm869, %v880, %v882
      %v884 = vshll.u32 %v844, 8
      %v885 = vmul.u32.u64.compose %v884, %v883
      %v886 = vextract.low.u32 %v885
      %v887 = vextract.high.u32 %v885
      %v888 = vmul.u32.u64.compose %v884, %v879
      %v889 = vextract.low.u32 %v888
      %v890 = vextract.high.u32 %v888
      %v891 = vmul.u32 %v884, %v875
      %v892 = vadd.s32 %v887, %v889
      %vm893 = vc.u32 %v887, %v889
      %v894 = vadd.s32 %v890, 1
      %v895 = vsel %vm893, %v894, %v890
      %v896 = vadd.s32 %v891, %v895
      %v897 = vadd.s32 %v896, 536870912
      %v898 = vshrl.u32 %v897, 30
      %v899 = vshll.u32 %v898, 30
      %v900 = vsub.s32 %v896, %v899
      %vm901 = vcmp.lt.s32.totalorder %v900, 0
      %v902 = vsub.s32 0, %v900
      %v903 = vsel %vm901, %v902, %v900
      %v904 = vclz %v903
      %v905 = vsub.s32 %v904, 2
      %vm906 = vcmp.gt.s32.totalorder 0, %v905
      %v907 = vsel %vm906, 0, %v905
      %v908 = vsub.s32 32, %v907
      %v909 = vshll.u32 %v900, %v907
      %v910 = vshrl.u32 %v892, %v908
      %v911 = vor.u32 %v909, %v910
      %v912 = vsub.s32 4294967266, %v907
      %v913 = vadd.s32 %v912, 127
      %v914 = vshll.u32 %v913, 23
      %v915 = vor.u32 4788187, %v914
      %v916 = vand.u32 2147483647, %v915
      %v918 = vcvt.s32.f32 %v911
      %v919 = vmul.f32 %v918, %v916
      %v920 = vxor.u32 %v919, 2147483648
      %v921 = vsel %vm838, %v920, %v919
      %v922 = vsub.s32 4, %v898
      %v923 = vsel %vm838, %v922, %v898
      %v924 = vsel %vm837, %v835, %v921
      %v925 = vsel %vm837, 0, %v923
      %v926 = vcosq.f32.pop %v924
      %v927 = vsinq.f32.pop %v924
      %vm928 = vweird.f32 %v835
      %v929 = vadd.s32 %v925, 3
      %v930 = vand.u32 %v929, 3
      %vm931 = vcmp.lt.s32.totalorder %v930, 2
      %vm932 = vcmp.eq.s32.totalorder %v930, 0
      %v933 = vxor.u32 %v927, 2147483648
      %v934 = vsel %vm932, %v926, %v933
      %vm935 = vcmp.eq.s32.totalorder %v930, 2
      %v936 = vxor.u32 %v926, 2147483648
      %v937 = vsel %vm935, %v936, %v927
      %v938 = vsel %vm931, %v934, %v937
      %v939 = vsel %vm928, nan, %v938
      %v940 = vld [vmem:[%s552] sm:$0xff]
      %942 = vrot.lane.b32.xlu0 %v939, 32
      %v943 = vpop.permute.xlu0 %942
      %v945 = vsel %vm582, %v940, %v943
      %946 = vst.msk [vmem:[#allocation2] sm:$0xff] %vm672, 0.0
      %947 = vst.msk [vmem:[#allocation2 + $0x8] sm:$0xff] %vm672, 0.0
      %vm948 = vcmask 519168
      %949 = vst.msk [vmem:[#allocation2 + $0x10] sm:$0xf] %vm948, 0.0
      %vm950 = vcmask 516096
      %951 = vst.msk [vmem:[#allocation2 + $0x2] sm:$0x1] %vm950, %v945
      %952 = vst.msk [vmem:[#allocation2 + $0x3] sm:$0x1] %vm950, %v945
      %vm953 = vcmask 517121
      %954 = vst.msk [vmem:[#allocation2 + $0x3] sm:$0x2] %vm953, %v945
      %955 = vst.msk [vmem:[#allocation2 + $0x4] sm:$0x2] %vm953, %v945
      %vm956 = vcmask 518146
      %957 = vst.msk [vmem:[#allocation2 + $0x4] sm:$0x4] %vm956, %v945
      %958 = vst.msk [vmem:[#allocation2 + $0x5] sm:$0x4] %vm956, %v945
      %vm959 = vcmask 519171
      %960 = vst.msk [vmem:[#allocation2 + $0x5] sm:$0x8] %vm959, %v945
      %961 = vst.msk [vmem:[#allocation2 + $0x6] sm:$0x8] %vm959, %v945
      %vm962 = vcmask 520196
      %963 = vst.msk [vmem:[#allocation2 + $0x6] sm:$0x10] %vm962, %v945
      %964 = vst.msk [vmem:[#allocation2 + $0x7] sm:$0x10] %vm962, %v945
      %vm965 = vcmask 521221
      %966 = vst.msk [vmem:[#allocation2 + $0x7] sm:$0x20] %vm965, %v945
      %967 = vst.msk [vmem:[#allocation2 + $0x8] sm:$0x20] %vm965, %v945
      %vm968 = vcmask 522246
      %969 = vst.msk [vmem:[#allocation2 + $0x8] sm:$0x40] %vm968, %v945
      %970 = vst.msk [vmem:[#allocation2 + $0x9] sm:$0x40] %vm968, %v945
      %vm971 = vcmask 523271
      %972 = vst.msk [vmem:[#allocation2 + $0x9] sm:$0x80] %vm971, %v945
      %973 = vst.msk [vmem:[#allocation2 + $0xa] sm:$0x80] %vm971, %v945
      %v974 = vld [vmem:[#allocation2] sm:$0xff]
      %v975 = vld [vmem:[#allocation2 + $0x8] sm:$0xff]
      %v976 = vld [vmem:[%s10] sm:$0xff]
      %v977 = vld [vmem:[%s10 + $0x8] sm:$0xff]
      %v978 = vld [vmem:[%s10 + $0x10] sm:$0xff]
      %v979 = vld [vmem:[%s10 + $0x18] sm:$0xff]
      %v980 = vld [vmem:[%s10 + $0x20] sm:$0xff]
      %v981 = vld [vmem:[%s10 + $0x28] sm:$0xff]
      %v982 = vld [vmem:[%s10 + $0x30] sm:$0xff]
      %v983 = vld [vmem:[%s10 + $0x38] sm:$0xff]
      %v984 = vld [vmem:[#allocation2 + $0x1] sm:$0xff]
      %v985 = vld [vmem:[#allocation2 + $0x9] sm:$0xff]
      %s986 = scalar_lea.vmem %s10, 64
      %v987 = vld [vmem:[%s986] sm:$0xff]
      %v988 = vld [vmem:[%s986 + $0x8] sm:$0xff]
      %v989 = vld [vmem:[%s986 + $0x10] sm:$0xff]
      %v990 = vld [vmem:[%s986 + $0x18] sm:$0xff]
      %v991 = vld [vmem:[%s986 + $0x20] sm:$0xff]
      %v992 = vld [vmem:[%s986 + $0x28] sm:$0xff]
      %v993 = vld [vmem:[%s986 + $0x30] sm:$0xff]
      %v994 = vld [vmem:[%s986 + $0x38] sm:$0xff]
      %v996 = vsel %vm672, %v984, 0
      %v999 = vsel %vm672, %v985, 0
      %1001 = vmatprep.subr.mxu0 0.0
      %1002 = vmatpush1.msra.mxu0 %v987
      %1003 = vmatprep.subr.mxu0 0.0
      %1004 = vmatpush1.msra.mxu0 %v988
      %1005 = vmatprep.subr.mxu0 0.0
      %1006 = vmatpush1.msra.mxu0 %v989
      %1007 = vmatprep.subr.mxu0 0.0
      %1008 = vmatpush1.msra.mxu0 %v990
      %1009 = vmatprep.subr.mxu0 0.0
      %1010 = vmatpush1.msra.mxu0 %v991
      %1011 = vmatprep.subr.mxu0 0.0
      %1012 = vmatpush1.msra.mxu0 %v992
      %1013 = vmatprep.subr.mxu0 0.0
      %1014 = vmatpush1.msra.mxu0 %v993
      %1015 = vmatprep.subr.mxu0 0.0
      %1016 = vmatpush1.msra.mxu0 %v994
      %1017 = vmatprep.subr.mxu0 0.0
      %1018 = vmatpush1.msra.mxu0 0.0
      %1019 = vmatprep.subr.mxu0 0.0
      %1020 = vmatpush1.msra.mxu0 0.0
      %1021 = vmatprep.subr.mxu0 0.0
      %1022 = vmatpush1.msra.mxu0 0.0
      %1023 = vmatprep.subr.mxu0 0.0
      %1024 = vmatpush1.msra.mxu0 0.0
      %1025 = vmatprep.subr.mxu0 0.0
      %1026 = vmatpush1.msra.mxu0 0.0
      %1027 = vmatprep.subr.mxu0 0.0
      %1028 = vmatpush1.msra.mxu0 0.0
      %1029 = vmatprep.subr.mxu0 0.0
      %1030 = vmatpush1.msra.mxu0 0.0
      %1031 = vmatprep.subr.mxu0 0.0
      %1032 = vmatpush1.msra.mxu0 0.0
      %1033 = vmatprep.subr.mxu0 0.0
      %1034 = vmatpush1.msra.mxu0 0.0
      %1035 = vmatprep.subr.mxu0 0.0
      %1036 = vmatpush1.msra.mxu0 0.0
      %1037 = vmatprep.subr.mxu0 0.0
      %1038 = vmatpush1.msra.mxu0 0.0
      %1039 = vmatprep.subr.mxu0 0.0
      %1040 = vmatpush1.msra.mxu0 0.0
      %1041 = vmatprep.subr.mxu0 0.0
      %1042 = vmatpush1.msra.mxu0 0.0
      %1043 = vmatprep.subr.mxu0 0.0
      %1044 = vmatpush1.msra.mxu0 0.0
      %1045 = vmatprep.subr.mxu0 0.0
      %1046 = vmatpush1.msra.mxu0 0.0
      %1047 = vmatprep.subr.mxu0 0.0
      %1048 = vmatpush1.msra.mxu0 0.0
      %1049 = vmatprep.subr.mxu0 0.0
      %1050 = vmatpush1.msra.mxu0 0.0
      %1051 = vmatprep.subr.mxu0 0.0
      %1052 = vmatpush1.msra.mxu0 0.0
      %1053 = vmatprep.subr.mxu0 0.0
      %1054 = vmatpush1.msra.mxu0 0.0
      %1055 = vmatprep.subr.mxu0 0.0
      %1056 = vmatpush1.msra.mxu0 0.0
      %1057 = vmatprep.subr.mxu0 0.0
      %1058 = vmatpush1.msra.mxu0 0.0
      %1059 = vmatprep.subr.mxu0 0.0
      %1060 = vmatpush1.msra.mxu0 0.0
      %1061 = vmatprep.subr.mxu0 0.0
      %1062 = vmatpush1.msra.mxu0 0.0
      %1063 = vmatprep.subr.mxu0 0.0
      %1064 = vmatpush1.msra.mxu0 0.0
      %1065 = vmatprep.mubr.f32.mxu0 0.0
      %1066 = vmatmul.mubr.f32.gmra.mrb[0].mxu0 %v996
      %v1067 = vpop.f32.mrb[0].mxu0
      %v1068 = vadd.f32 0.0, %v1067
      %v1069 = vpop.f32.mrb[0].mxu0
      %1070 = vmatprep.mubr.f32.mxu0 0.0
      %1071 = vmatmul.mubr.f32.gmra.mrb[0].mxu0 %v999
      %v1072 = vpop.f32.mrb[0].mxu0
      %v1073 = vadd.f32 0.0, %v1072
      %v1074 = vpop.f32.mrb[0].mxu0
      %1075 = vdwg.mxu0
      %v1077 = vsel %vm672, %v974, 0
      %v1080 = vsel %vm672, %v975, 0
      %1082 = vmatprep.subr.mxu0 0.0
      %1083 = vmatpush1.msra.mxu0 %v976
      %1084 = vmatprep.subr.mxu0 0.0
      %1085 = vmatpush1.msra.mxu0 %v977
      %1086 = vmatprep.subr.mxu0 0.0
      %1087 = vmatpush1.msra.mxu0 %v978
      %1088 = vmatprep.subr.mxu0 0.0
      %1089 = vmatpush1.msra.mxu0 %v979
      %1090 = vmatprep.subr.mxu0 0.0
      %1091 = vmatpush1.msra.mxu0 %v980
      %1092 = vmatprep.subr.mxu0 0.0
      %1093 = vmatpush1.msra.mxu0 %v981
      %1094 = vmatprep.subr.mxu0 0.0
      %1095 = vmatpush1.msra.mxu0 %v982
      %1096 = vmatprep.subr.mxu0 0.0
      %1097 = vmatpush1.msra.mxu0 %v983
      %1098 = vmatprep.subr.mxu0 0.0
      %1099 = vmatpush1.msra.mxu0 0.0
      %1100 = vmatprep.subr.mxu0 0.0
      %1101 = vmatpush1.msra.mxu0 0.0
      %1102 = vmatprep.subr.mxu0 0.0
      %1103 = vmatpush1.msra.mxu0 0.0
      %1104 = vmatprep.subr.mxu0 0.0
      %1105 = vmatpush1.msra.mxu0 0.0
      %1106 = vmatprep.subr.mxu0 0.0
      %1107 = vmatpush1.msra.mxu0 0.0
      %1108 = vmatprep.subr.mxu0 0.0
      %1109 = vmatpush1.msra.mxu0 0.0
      %1110 = vmatprep.subr.mxu0 0.0
      %1111 = vmatpush1.msra.mxu0 0.0
      %1112 = vmatprep.subr.mxu0 0.0
      %1113 = vmatpush1.msra.mxu0 0.0
      %1114 = vmatprep.subr.mxu0 0.0
      %1115 = vmatpush1.msra.mxu0 0.0
      %1116 = vmatprep.subr.mxu0 0.0
      %1117 = vmatpush1.msra.mxu0 0.0
      %1118 = vmatprep.subr.mxu0 0.0
      %1119 = vmatpush1.msra.mxu0 0.0
      %1120 = vmatprep.subr.mxu0 0.0
      %1121 = vmatpush1.msra.mxu0 0.0
      %1122 = vmatprep.subr.mxu0 0.0
      %1123 = vmatpush1.msra.mxu0 0.0
      %1124 = vmatprep.subr.mxu0 0.0
      %1125 = vmatpush1.msra.mxu0 0.0
      %1126 = vmatprep.subr.mxu0 0.0
      %1127 = vmatpush1.msra.mxu0 0.0
      %1128 = vmatprep.subr.mxu0 0.0
      %1129 = vmatpush1.msra.mxu0 0.0
      %1130 = vmatprep.subr.mxu0 0.0
      %1131 = vmatpush1.msra.mxu0 0.0
      %1132 = vmatprep.subr.mxu0 0.0
      %1133 = vmatpush1.msra.mxu0 0.0
      %1134 = vmatprep.subr.mxu0 0.0
      %1135 = vmatpush1.msra.mxu0 0.0
      %1136 = vmatprep.subr.mxu0 0.0
      %1137 = vmatpush1.msra.mxu0 0.0
      %1138 = vmatprep.subr.mxu0 0.0
      %1139 = vmatpush1.msra.mxu0 0.0
      %1140 = vmatprep.subr.mxu0 0.0
      %1141 = vmatpush1.msra.mxu0 0.0
      %1142 = vmatprep.subr.mxu0 0.0
      %1143 = vmatpush1.msra.mxu0 0.0
      %1144 = vmatprep.subr.mxu0 0.0
      %1145 = vmatpush1.msra.mxu0 0.0
      %1146 = vmatprep.mubr.f32.mxu0 0.0
      %1147 = vmatmul.mubr.f32.gmra.mrb[0].mxu0 %v1077
      %v1148 = vpop.f32.mrb[0].mxu0
      %v1149 = vadd.f32 %v1068, %v1148
      %v1150 = vpop.f32.mrb[0].mxu0
      %1151 = vmatprep.mubr.f32.mxu0 0.0
      %1152 = vmatmul.mubr.f32.gmra.mrb[0].mxu0 %v1080
      %v1153 = vpop.f32.mrb[0].mxu0
      %v1154 = vadd.f32 %v1073, %v1153
      %v1155 = vpop.f32.mrb[0].mxu0
      %1156 = vdwg.mxu0
      %v1157 = vld [vmem:[#allocation2 + $0x2] sm:$0xff]
      %v1158 = vld [vmem:[#allocation2 + $0xa] sm:$0xff]
      %s1159 = scalar_lea.vmem %s10, 128
      %v1160 = vld [vmem:[%s1159] sm:$0xff]
      %v1161 = vld [vmem:[%s1159 + $0x8] sm:$0xff]
      %v1162 = vld [vmem:[%s1159 + $0x10] sm:$0xff]
      %v1163 = vld [vmem:[%s1159 + $0x18] sm:$0xff]
      %v1164 = vld [vmem:[%s1159 + $0x20] sm:$0xff]
      %v1165 = vld [vmem:[%s1159 + $0x28] sm:$0xff]
      %v1166 = vld [vmem:[%s1159 + $0x30] sm:$0xff]
      %v1167 = vld [vmem:[%s1159 + $0x38] sm:$0xff]
      %v1169 = vsel %vm672, %v1157, 0
      %v1172 = vsel %vm672, %v1158, 0
      %1174 = vmatprep.subr.mxu0 0.0
      %1175 = vmatpush1.msra.mxu0 %v1160
      %1176 = vmatprep.subr.mxu0 0.0
      %1177 = vmatpush1.msra.mxu0 %v1161
      %1178 = vmatprep.subr.mxu0 0.0
      %1179 = vmatpush1.msra.mxu0 %v1162
      %1180 = vmatprep.subr.mxu0 0.0
      %1181 = vmatpush1.msra.mxu0 %v1163
      %1182 = vmatprep.subr.mxu0 0.0
      %1183 = vmatpush1.msra.mxu0 %v1164
      %1184 = vmatprep.subr.mxu0 0.0
      %1185 = vmatpush1.msra.mxu0 %v1165
      %1186 = vmatprep.subr.mxu0 0.0
      %1187 = vmatpush1.msra.mxu0 %v1166
      %1188 = vmatprep.subr.mxu0 0.0
      %1189 = vmatpush1.msra.mxu0 %v1167
      %1190 = vmatprep.subr.mxu0 0.0
      %1191 = vmatpush1.msra.mxu0 0.0
      %1192 = vmatprep.subr.mxu0 0.0
      %1193 = vmatpush1.msra.mxu0 0.0
      %1194 = vmatprep.subr.mxu0 0.0
      %1195 = vmatpush1.msra.mxu0 0.0
      %1196 = vmatprep.subr.mxu0 0.0
      %1197 = vmatpush1.msra.mxu0 0.0
      %1198 = vmatprep.subr.mxu0 0.0
      %1199 = vmatpush1.msra.mxu0 0.0
      %1200 = vmatprep.subr.mxu0 0.0
      %1201 = vmatpush1.msra.mxu0 0.0
      %1202 = vmatprep.subr.mxu0 0.0
      %1203 = vmatpush1.msra.mxu0 0.0
      %1204 = vmatprep.subr.mxu0 0.0
      %1205 = vmatpush1.msra.mxu0 0.0
      %1206 = vmatprep.subr.mxu0 0.0
      %1207 = vmatpush1.msra.mxu0 0.0
      %1208 = vmatprep.subr.mxu0 0.0
      %1209 = vmatpush1.msra.mxu0 0.0
      %1210 = vmatprep.subr.mxu0 0.0
      %1211 = vmatpush1.msra.mxu0 0.0
      %1212 = vmatprep.subr.mxu0 0.0
      %1213 = vmatpush1.msra.mxu0 0.0
      %1214 = vmatprep.subr.mxu0 0.0
      %1215 = vmatpush1.msra.mxu0 0.0
      %1216 = vmatprep.subr.mxu0 0.0
      %1217 = vmatpush1.msra.mxu0 0.0
      %1218 = vmatprep.subr.mxu0 0.0
      %1219 = vmatpush1.msra.mxu0 0.0
      %1220 = vmatprep.subr.mxu0 0.0
      %1221 = vmatpush1.msra.mxu0 0.0
      %1222 = vmatprep.subr.mxu0 0.0
      %1223 = vmatpush1.msra.mxu0 0.0
      %1224 = vmatprep.subr.mxu0 0.0
      %1225 = vmatpush1.msra.mxu0 0.0
      %1226 = vmatprep.subr.mxu0 0.0
      %1227 = vmatpush1.msra.mxu0 0.0
      %1228 = vmatprep.subr.mxu0 0.0
      %1229 = vmatpush1.msra.mxu0 0.0
      %1230 = vmatprep.subr.mxu0 0.0
      %1231 = vmatpush1.msra.mxu0 0.0
      %1232 = vmatprep.subr.mxu0 0.0
      %1233 = vmatpush1.msra.mxu0 0.0
      %1234 = vmatprep.subr.mxu0 0.0
      %1235 = vmatpush1.msra.mxu0 0.0
      %1236 = vmatprep.subr.mxu0 0.0
      %1237 = vmatpush1.msra.mxu0 0.0
      %1238 = vmatprep.mubr.f32.mxu0 0.0
      %1239 = vmatmul.mubr.f32.gmra.mrb[0].mxu0 %v1169
      %v1240 = vpop.f32.mrb[0].mxu0
      %v1241 = vadd.f32 0.0, %v1240
      %v1242 = vpop.f32.mrb[0].mxu0
      %1243 = vmatprep.mubr.f32.mxu0 0.0
      %1244 = vmatmul.mubr.f32.gmra.mrb[0].mxu0 %v1172
      %v1245 = vpop.f32.mrb[0].mxu0
      %v1246 = vadd.f32 0.0, %v1245
      %v1247 = vpop.f32.mrb[0].mxu0
      %1248 = vdwg.mxu0
      %v1249 = vadd.f32 %v1149, %v1241
      %v1250 = vadd.f32 %v1154, %v1246
      %v1251 = vld [vmem:[#allocation2 + $0x3] sm:$0xff]
      %v1252 = vld [vmem:[#allocation2 + $0xb] sm:$0xff]
      %s1253 = scalar_lea.vmem %s10, 192
      %v1254 = vld [vmem:[%s1253] sm:$0xff]
      %v1255 = vld [vmem:[%s1253 + $0x8] sm:$0xff]
      %v1256 = vld [vmem:[%s1253 + $0x10] sm:$0xff]
      %v1257 = vld [vmem:[%s1253 + $0x18] sm:$0xff]
      %v1258 = vld [vmem:[%s1253 + $0x20] sm:$0xff]
      %v1259 = vld [vmem:[%s1253 + $0x28] sm:$0xff]
      %v1260 = vld [vmem:[%s1253 + $0x30] sm:$0xff]
      %v1261 = vld [vmem:[%s1253 + $0x38] sm:$0xff]
      %v1263 = vsel %vm672, %v1251, 0
      %v1266 = vsel %vm672, %v1252, 0
      %1268 = vmatprep.subr.mxu0 0.0
      %1269 = vmatpush1.msra.mxu0 %v1254
      %1270 = vmatprep.subr.mxu0 0.0
      %1271 = vmatpush1.msra.mxu0 %v1255
      %1272 = vmatprep.subr.mxu0 0.0
      %1273 = vmatpush1.msra.mxu0 %v1256
      %1274 = vmatprep.subr.mxu0 0.0
      %1275 = vmatpush1.msra.mxu0 %v1257
      %1276 = vmatprep.subr.mxu0 0.0
      %1277 = vmatpush1.msra.mxu0 %v1258
      %1278 = vmatprep.subr.mxu0 0.0
      %1279 = vmatpush1.msra.mxu0 %v1259
      %1280 = vmatprep.subr.mxu0 0.0
      %1281 = vmatpush1.msra.mxu0 %v1260
      %1282 = vmatprep.subr.mxu0 0.0
      %1283 = vmatpush1.msra.mxu0 %v1261
      %1284 = vmatprep.subr.mxu0 0.0
      %1285 = vmatpush1.msra.mxu0 0.0
      %1286 = vmatprep.subr.mxu0 0.0
      %1287 = vmatpush1.msra.mxu0 0.0
      %1288 = vmatprep.subr.mxu0 0.0
      %1289 = vmatpush1.msra.mxu0 0.0
      %1290 = vmatprep.subr.mxu0 0.0
      %1291 = vmatpush1.msra.mxu0 0.0
      %1292 = vmatprep.subr.mxu0 0.0
      %1293 = vmatpush1.msra.mxu0 0.0
      %1294 = vmatprep.subr.mxu0 0.0
      %1295 = vmatpush1.msra.mxu0 0.0
      %1296 = vmatprep.subr.mxu0 0.0
      %1297 = vmatpush1.msra.mxu0 0.0
      %1298 = vmatprep.subr.mxu0 0.0
      %1299 = vmatpush1.msra.mxu0 0.0
      %1300 = vmatprep.subr.mxu0 0.0
      %1301 = vmatpush1.msra.mxu0 0.0
      %1302 = vmatprep.subr.mxu0 0.0
      %1303 = vmatpush1.msra.mxu0 0.0
      %1304 = vmatprep.subr.mxu0 0.0
      %1305 = vmatpush1.msra.mxu0 0.0
      %1306 = vmatprep.subr.mxu0 0.0
      %1307 = vmatpush1.msra.mxu0 0.0
      %1308 = vmatprep.subr.mxu0 0.0
      %1309 = vmatpush1.msra.mxu0 0.0
      %1310 = vmatprep.subr.mxu0 0.0
      %1311 = vmatpush1.msra.mxu0 0.0
      %1312 = vmatprep.subr.mxu0 0.0
      %1313 = vmatpush1.msra.mxu0 0.0
      %1314 = vmatprep.subr.mxu0 0.0
      %1315 = vmatpush1.msra.mxu0 0.0
      %1316 = vmatprep.subr.mxu0 0.0
      %1317 = vmatpush1.msra.mxu0 0.0
      %1318 = vmatprep.subr.mxu0 0.0
      %1319 = vmatpush1.msra.mxu0 0.0
      %1320 = vmatprep.subr.mxu0 0.0
      %1321 = vmatpush1.msra.mxu0 0.0
      %1322 = vmatprep.subr.mxu0 0.0
      %1323 = vmatpush1.msra.mxu0 0.0
      %1324 = vmatprep.subr.mxu0 0.0
      %1325 = vmatpush1.msra.mxu0 0.0
      %1326 = vmatprep.subr.mxu0 0.0
      %1327 = vmatpush1.msra.mxu0 0.0
      %1328 = vmatprep.subr.mxu0 0.0
      %1329 = vmatpush1.msra.mxu0 0.0
      %1330 = vmatprep.subr.mxu0 0.0
      %1331 = vmatpush1.msra.mxu0 0.0
      %1332 = vmatprep.mubr.f32.mxu0 0.0
      %1333 = vmatmul.mubr.f32.gmra.mrb[0].mxu0 %v1263
      %v1334 = vpop.f32.mrb[0].mxu0
      %v1335 = vadd.f32 0.0, %v1334
      %v1336 = vpop.f32.mrb[0].mxu0
      %1337 = vmatprep.mubr.f32.mxu0 0.0
      %1338 = vmatmul.mubr.f32.gmra.mrb[0].mxu0 %v1266
      %v1339 = vpop.f32.mrb[0].mxu0
      %v1340 = vadd.f32 0.0, %v1339
      %v1341 = vpop.f32.mrb[0].mxu0
      %1342 = vdwg.mxu0
      %v1343 = vadd.f32 %v1249, %v1335
      %v1344 = vadd.f32 %v1250, %v1340
      %v1345 = vld [vmem:[#allocation2 + $0x4] sm:$0xff]
      %v1346 = vld [vmem:[#allocation2 + $0xc] sm:$0xff]
      %s1347 = scalar_lea.vmem %s10, 256
      %v1348 = vld [vmem:[%s1347] sm:$0xff]
      %v1349 = vld [vmem:[%s1347 + $0x8] sm:$0xff]
      %v1350 = vld [vmem:[%s1347 + $0x10] sm:$0xff]
      %v1351 = vld [vmem:[%s1347 + $0x18] sm:$0xff]
      %v1352 = vld [vmem:[%s1347 + $0x20] sm:$0xff]
      %v1353 = vld [vmem:[%s1347 + $0x28] sm:$0xff]
      %v1354 = vld [vmem:[%s1347 + $0x30] sm:$0xff]
      %v1355 = vld [vmem:[%s1347 + $0x38] sm:$0xff]
      %v1357 = vsel %vm672, %v1345, 0
      %v1360 = vsel %vm672, %v1346, 0
      %1362 = vmatprep.subr.mxu0 0.0
      %1363 = vmatpush1.msra.mxu0 %v1348
      %1364 = vmatprep.subr.mxu0 0.0
      %1365 = vmatpush1.msra.mxu0 %v1349
      %1366 = vmatprep.subr.mxu0 0.0
      %1367 = vmatpush1.msra.mxu0 %v1350
      %1368 = vmatprep.subr.mxu0 0.0
      %1369 = vmatpush1.msra.mxu0 %v1351
      %1370 = vmatprep.subr.mxu0 0.0
      %1371 = vmatpush1.msra.mxu0 %v1352
      %1372 = vmatprep.subr.mxu0 0.0
      %1373 = vmatpush1.msra.mxu0 %v1353
      %1374 = vmatprep.subr.mxu0 0.0
      %1375 = vmatpush1.msra.mxu0 %v1354
      %1376 = vmatprep.subr.mxu0 0.0
      %1377 = vmatpush1.msra.mxu0 %v1355
      %1378 = vmatprep.subr.mxu0 0.0
      %1379 = vmatpush1.msra.mxu0 0.0
      %1380 = vmatprep.subr.mxu0 0.0
      %1381 = vmatpush1.msra.mxu0 0.0
      %1382 = vmatprep.subr.mxu0 0.0
      %1383 = vmatpush1.msra.mxu0 0.0
      %1384 = vmatprep.subr.mxu0 0.0
      %1385 = vmatpush1.msra.mxu0 0.0
      %1386 = vmatprep.subr.mxu0 0.0
      %1387 = vmatpush1.msra.mxu0 0.0
      %1388 = vmatprep.subr.mxu0 0.0
      %1389 = vmatpush1.msra.mxu0 0.0
      %1390 = vmatprep.subr.mxu0 0.0
      %1391 = vmatpush1.msra.mxu0 0.0
      %1392 = vmatprep.subr.mxu0 0.0
      %1393 = vmatpush1.msra.mxu0 0.0
      %1394 = vmatprep.subr.mxu0 0.0
      %1395 = vmatpush1.msra.mxu0 0.0
      %1396 = vmatprep.subr.mxu0 0.0
      %1397 = vmatpush1.msra.mxu0 0.0
      %1398 = vmatprep.subr.mxu0 0.0
      %1399 = vmatpush1.msra.mxu0 0.0
      %1400 = vmatprep.subr.mxu0 0.0
      %1401 = vmatpush1.msra.mxu0 0.0
      %1402 = vmatprep.subr.mxu0 0.0
      %1403 = vmatpush1.msra.mxu0 0.0
      %1404 = vmatprep.subr.mxu0 0.0
      %1405 = vmatpush1.msra.mxu0 0.0
      %1406 = vmatprep.subr.mxu0 0.0
      %1407 = vmatpush1.msra.mxu0 0.0
      %1408 = vmatprep.subr.mxu0 0.0
      %1409 = vmatpush1.msra.mxu0 0.0
      %1410 = vmatprep.subr.mxu0 0.0
      %1411 = vmatpush1.msra.mxu0 0.0
      %1412 = vmatprep.subr.mxu0 0.0
      %1413 = vmatpush1.msra.mxu0 0.0
      %1414 = vmatprep.subr.mxu0 0.0
      %1415 = vmatpush1.msra.mxu0 0.0
      %1416 = vmatprep.subr.mxu0 0.0
      %1417 = vmatpush1.msra.mxu0 0.0
      %1418 = vmatprep.subr.mxu0 0.0
      %1419 = vmatpush1.msra.mxu0 0.0
      %1420 = vmatprep.subr.mxu0 0.0
      %1421 = vmatpush1.msra.mxu0 0.0
      %1422 = vmatprep.subr.mxu0 0.0
      %1423 = vmatpush1.msra.mxu0 0.0
      %1424 = vmatprep.subr.mxu0 0.0
      %1425 = vmatpush1.msra.mxu0 0.0
      %1426 = vmatprep.mubr.f32.mxu0 0.0
      %1427 = vmatmul.mubr.f32.gmra.mrb[0].mxu0 %v1357
      %v1428 = vpop.f32.mrb[0].mxu0
      %v1429 = vadd.f32 0.0, %v1428
      %v1430 = vpop.f32.mrb[0].mxu0
      %1431 = vmatprep.mubr.f32.mxu0 0.0
      %1432 = vmatmul.mubr.f32.gmra.mrb[0].mxu0 %v1360
      %v1433 = vpop.f32.mrb[0].mxu0
      %v1434 = vadd.f32 0.0, %v1433
      %v1435 = vpop.f32.mrb[0].mxu0
      %1436 = vdwg.mxu0
      %v1437 = vadd.f32 %v1343, %v1429
      %v1438 = vadd.f32 %v1344, %v1434
      %v1439 = vld [vmem:[%s11] sm:$0x1]
      %v1441 = vlaneseq
      %v1442 = vshrl.u32 %v1441, 7
      %v1443 = vsub.s32 0, %v1442
      %v1444 = vrot.slane %v1439, %v1443
      %v1446 = vmul.f32 %v1437, %v1444
      %v1447 = vmul.f32 %v1438, %v1444
      %v1448 = vld [vmem:[%s12] sm:$0x1]
      %v1450 = vlaneseq
      %v1451 = vshrl.u32 %v1450, 7
      %v1452 = vsub.s32 0, %v1451
      %v1453 = vrot.slane %v1448, %v1452
      %v1455 = vadd.f32 %v1446, %v1453
      %v1456 = vadd.f32 %v1447, %v1453
      %v1457 = vmax.f32 %v1455, 0.0
      %v1458 = vmax.f32 %v1456, 0.0
      %1459 = vst [vmem:[#allocation3] sm:$0xff] 0.0
      %1460 = vst [vmem:[#allocation3 + $0x8] sm:$0xff] 0.0
      %1461 = vst [vmem:[#allocation3 + $0x10] sm:$0xff] 0.0
      %1462 = vst [vmem:[#allocation3 + $0x18] sm:$0xff] 0.0
      %1463 = vst [vmem:[#allocation3 + $0x20] sm:$0xf] 0.0
      %1464 = vst [vmem:[#allocation3 + $0x2] sm:$0x1] %v1457
      %1465 = vst [vmem:[#allocation3 + $0x3] sm:$0x1] %v1457
      %1466 = vst [vmem:[#allocation3 + $0x3] sm:$0x2] %v1457
      %1467 = vst [vmem:[#allocation3 + $0x4] sm:$0x2] %v1457
      %1468 = vst [vmem:[#allocation3 + $0x4] sm:$0x4] %v1457
      %1469 = vst [vmem:[#allocation3 + $0x5] sm:$0x4] %v1457
      %1470 = vst [vmem:[#allocation3 + $0x5] sm:$0x8] %v1457
      %1471 = vst [vmem:[#allocation3 + $0x6] sm:$0x8] %v1457
      %1472 = vst [vmem:[#allocation3 + $0x6] sm:$0x10] %v1457
      %1473 = vst [vmem:[#allocation3 + $0x7] sm:$0x10] %v1457
      %1474 = vst [vmem:[#allocation3 + $0x7] sm:$0x20] %v1457
      %1475 = vst [vmem:[#allocation3 + $0x8] sm:$0x20] %v1457
      %1476 = vst [vmem:[#allocation3 + $0x8] sm:$0x40] %v1457
      %1477 = vst [vmem:[#allocation3 + $0x9] sm:$0x40] %v1457
      %1478 = vst [vmem:[#allocation3 + $0x9] sm:$0x80] %v1457
      %1479 = vst [vmem:[#allocation3 + $0xa] sm:$0x80] %v1457
      %1480 = vst [vmem:[#allocation3 + $0x12] sm:$0x1] %v1458
      %1481 = vst [vmem:[#allocation3 + $0x13] sm:$0x1] %v1458
      %1482 = vst [vmem:[#allocation3 + $0x13] sm:$0x2] %v1458
      %1483 = vst [vmem:[#allocation3 + $0x14] sm:$0x2] %v1458
      %1484 = vst [vmem:[#allocation3 + $0x14] sm:$0x4] %v1458
      %1485 = vst [vmem:[#allocation3 + $0x15] sm:$0x4] %v1458
      %1486 = vst [vmem:[#allocation3 + $0x15] sm:$0x8] %v1458
      %1487 = vst [vmem:[#allocation3 + $0x16] sm:$0x8] %v1458
      %1488 = vst [vmem:[#allocation3 + $0x16] sm:$0x10] %v1458
      %1489 = vst [vmem:[#allocation3 + $0x17] sm:$0x10] %v1458
      %1490 = vst [vmem:[#allocation3 + $0x17] sm:$0x20] %v1458
      %1491 = vst [vmem:[#allocation3 + $0x18] sm:$0x20] %v1458
      %1492 = vst [vmem:[#allocation3 + $0x18] sm:$0x40] %v1458
      %1493 = vst [vmem:[#allocation3 + $0x19] sm:$0x40] %v1458
      %1494 = vst [vmem:[#allocation3 + $0x19] sm:$0x80] %v1458
      %1495 = vst [vmem:[#allocation3 + $0x1a] sm:$0x80] %v1458
      %v1496 = vld [vmem:[#allocation3] sm:$0xff]
      %v1497 = vld [vmem:[#allocation3 + $0x8] sm:$0xff]
      %v1498 = vld [vmem:[#allocation3 + $0x10] sm:$0xff]
      %v1499 = vld [vmem:[#allocation3 + $0x18] sm:$0xff]
      %v1500 = vld [vmem:[%s13] sm:$0xff]
      %v1501 = vld [vmem:[%s13 + $0x8] sm:$0xff]
      %v1502 = vld [vmem:[%s13 + $0x10] sm:$0xff]
      %v1503 = vld [vmem:[%s13 + $0x18] sm:$0xff]
      %v1504 = vld [vmem:[%s13 + $0x20] sm:$0xff]
      %v1505 = vld [vmem:[%s13 + $0x28] sm:$0xff]
      %v1506 = vld [vmem:[%s13 + $0x30] sm:$0xff]
      %v1507 = vld [vmem:[%s13 + $0x38] sm:$0xff]
      %v1508 = vld [vmem:[%s13 + $0x40] sm:$0xff]
      %v1509 = vld [vmem:[%s13 + $0x48] sm:$0xff]
      %v1510 = vld [vmem:[%s13 + $0x50] sm:$0xff]
      %v1511 = vld [vmem:[%s13 + $0x58] sm:$0xff]
      %v1512 = vld [vmem:[%s13 + $0x60] sm:$0xff]
      %v1513 = vld [vmem:[%s13 + $0x68] sm:$0xff]
      %v1514 = vld [vmem:[%s13 + $0x70] sm:$0xff]
      %v1515 = vld [vmem:[%s13 + $0x78] sm:$0xff]
      %v1516 = vld [vmem:[#allocation3 + $0x1] sm:$0xff]
      %v1517 = vld [vmem:[#allocation3 + $0x9] sm:$0xff]
      %v1518 = vld [vmem:[#allocation3 + $0x11] sm:$0xff]
      %v1519 = vld [vmem:[#allocation3 + $0x19] sm:$0xff]
      %s1520 = scalar_lea.vmem %s13, 128
      %v1521 = vld [vmem:[%s1520] sm:$0xff]
      %v1522 = vld [vmem:[%s1520 + $0x8] sm:$0xff]
      %v1523 = vld [vmem:[%s1520 + $0x10] sm:$0xff]
      %v1524 = vld [vmem:[%s1520 + $0x18] sm:$0xff]
      %v1525 = vld [vmem:[%s1520 + $0x20] sm:$0xff]
      %v1526 = vld [vmem:[%s1520 + $0x28] sm:$0xff]
      %v1527 = vld [vmem:[%s1520 + $0x30] sm:$0xff]
      %v1528 = vld [vmem:[%s1520 + $0x38] sm:$0xff]
      %v1529 = vld [vmem:[%s1520 + $0x40] sm:$0xff]
      %v1530 = vld [vmem:[%s1520 + $0x48] sm:$0xff]
      %v1531 = vld [vmem:[%s1520 + $0x50] sm:$0xff]
      %v1532 = vld [vmem:[%s1520 + $0x58] sm:$0xff]
      %v1533 = vld [vmem:[%s1520 + $0x60] sm:$0xff]
      %v1534 = vld [vmem:[%s1520 + $0x68] sm:$0xff]
      %v1535 = vld [vmem:[%s1520 + $0x70] sm:$0xff]
      %v1536 = vld [vmem:[%s1520 + $0x78] sm:$0xff]
      %1537 = vmatprep.subr.mxu0 0.0
      %1538 = vmatpush1.msra.mxu0 %v1521
      %1539 = vmatprep.subr.mxu0 0.0
      %1540 = vmatpush1.msra.mxu0 %v1522
      %1541 = vmatprep.subr.mxu0 0.0
      %1542 = vmatpush1.msra.mxu0 %v1523
      %1543 = vmatprep.subr.mxu0 0.0
      %1544 = vmatpush1.msra.mxu0 %v1524
      %1545 = vmatprep.subr.mxu0 0.0
      %1546 = vmatpush1.msra.mxu0 %v1525
      %1547 = vmatprep.subr.mxu0 0.0
      %1548 = vmatpush1.msra.mxu0 %v1526
      %1549 = vmatprep.subr.mxu0 0.0
      %1550 = vmatpush1.msra.mxu0 %v1527
      %1551 = vmatprep.subr.mxu0 0.0
      %1552 = vmatpush1.msra.mxu0 %v1528
      %1553 = vmatprep.subr.mxu0 0.0
      %1554 = vmatpush1.msra.mxu0 %v1529
      %1555 = vmatprep.subr.mxu0 0.0
      %1556 = vmatpush1.msra.mxu0 %v1530
      %1557 = vmatprep.subr.mxu0 0.0
      %1558 = vmatpush1.msra.mxu0 %v1531
      %1559 = vmatprep.subr.mxu0 0.0
      %1560 = vmatpush1.msra.mxu0 %v1532
      %1561 = vmatprep.subr.mxu0 0.0
      %1562 = vmatpush1.msra.mxu0 %v1533
      %1563 = vmatprep.subr.mxu0 0.0
      %1564 = vmatpush1.msra.mxu0 %v1534
      %1565 = vmatprep.subr.mxu0 0.0
      %1566 = vmatpush1.msra.mxu0 %v1535
      %1567 = vmatprep.subr.mxu0 0.0
      %1568 = vmatpush1.msra.mxu0 %v1536
      %1569 = vmatprep.subr.mxu0 0.0
      %1570 = vmatpush1.msra.mxu0 0.0
      %1571 = vmatprep.subr.mxu0 0.0
      %1572 = vmatpush1.msra.mxu0 0.0
      %1573 = vmatprep.subr.mxu0 0.0
      %1574 = vmatpush1.msra.mxu0 0.0
      %1575 = vmatprep.subr.mxu0 0.0
      %1576 = vmatpush1.msra.mxu0 0.0
      %1577 = vmatprep.subr.mxu0 0.0
      %1578 = vmatpush1.msra.mxu0 0.0
      %1579 = vmatprep.subr.mxu0 0.0
      %1580 = vmatpush1.msra.mxu0 0.0
      %1581 = vmatprep.subr.mxu0 0.0
      %1582 = vmatpush1.msra.mxu0 0.0
      %1583 = vmatprep.subr.mxu0 0.0
      %1584 = vmatpush1.msra.mxu0 0.0
      %1585 = vmatprep.subr.mxu0 0.0
      %1586 = vmatpush1.msra.mxu0 0.0
      %1587 = vmatprep.subr.mxu0 0.0
      %1588 = vmatpush1.msra.mxu0 0.0
      %1589 = vmatprep.subr.mxu0 0.0
      %1590 = vmatpush1.msra.mxu0 0.0
      %1591 = vmatprep.subr.mxu0 0.0
      %1592 = vmatpush1.msra.mxu0 0.0
      %1593 = vmatprep.subr.mxu0 0.0
      %1594 = vmatpush1.msra.mxu0 0.0
      %1595 = vmatprep.subr.mxu0 0.0
      %1596 = vmatpush1.msra.mxu0 0.0
      %1597 = vmatprep.subr.mxu0 0.0
      %1598 = vmatpush1.msra.mxu0 0.0
      %1599 = vmatprep.subr.mxu0 0.0
      %1600 = vmatpush1.msra.mxu0 0.0
      %1601 = vmatprep.mubr.f32.mxu0 0.0
      %1602 = vmatmul.mubr.f32.gmra.mrb[0].mxu0 %v1516
      %v1603 = vpop.f32.mrb[0].mxu0
      %v1604 = vadd.f32 0.0, %v1603
      %v1605 = vpop.f32.mrb[0].mxu0
      %1606 = vmatprep.mubr.f32.mxu0 0.0
      %1607 = vmatmul.mubr.f32.gmra.mrb[0].mxu0 %v1517
      %v1608 = vpop.f32.mrb[0].mxu0
      %v1609 = vadd.f32 0.0, %v1608
      %v1610 = vpop.f32.mrb[0].mxu0
      %1611 = vmatprep.mubr.f32.mxu0 0.0
      %1612 = vmatmul.mubr.f32.gmra.mrb[0].mxu0 %v1518
      %v1613 = vpop.f32.mrb[0].mxu0
      %v1614 = vadd.f32 0.0, %v1613
      %v1615 = vpop.f32.mrb[0].mxu0
      %1616 = vmatprep.mubr.f32.mxu0 0.0
      %1617 = vmatmul.mubr.f32.gmra.mrb[0].mxu0 %v1519
      %v1618 = vpop.f32.mrb[0].mxu0
      %v1619 = vadd.f32 0.0, %v1618
      %v1620 = vpop.f32.mrb[0].mxu0
      %1621 = vdwg.mxu0
      %1622 = vmatprep.subr.mxu0 0.0
      %1623 = vmatpush1.msra.mxu0 %v1500
      %1624 = vmatprep.subr.mxu0 0.0
      %1625 = vmatpush1.msra.mxu0 %v1501
      %1626 = vmatprep.subr.mxu0 0.0
      %1627 = vmatpush1.msra.mxu0 %v1502
      %1628 = vmatprep.subr.mxu0 0.0
      %1629 = vmatpush1.msra.mxu0 %v1503
      %1630 = vmatprep.subr.mxu0 0.0
      %1631 = vmatpush1.msra.mxu0 %v1504
      %1632 = vmatprep.subr.mxu0 0.0
      %1633 = vmatpush1.msra.mxu0 %v1505
      %1634 = vmatprep.subr.mxu0 0.0
      %1635 = vmatpush1.msra.mxu0 %v1506
      %1636 = vmatprep.subr.mxu0 0.0
      %1637 = vmatpush1.msra.mxu0 %v1507
      %1638 = vmatprep.subr.mxu0 0.0
      %1639 = vmatpush1.msra.mxu0 %v1508
      %1640 = vmatprep.subr.mxu0 0.0
      %1641 = vmatpush1.msra.mxu0 %v1509
      %1642 = vmatprep.subr.mxu0 0.0
      %1643 = vmatpush1.msra.mxu0 %v1510
      %1644 = vmatprep.subr.mxu0 0.0
      %1645 = vmatpush1.msra.mxu0 %v1511
      %1646 = vmatprep.subr.mxu0 0.0
      %1647 = vmatpush1.msra.mxu0 %v1512
      %1648 = vmatprep.subr.mxu0 0.0
      %1649 = vmatpush1.msra.mxu0 %v1513
      %1650 = vmatprep.subr.mxu0 0.0
      %1651 = vmatpush1.msra.mxu0 %v1514
      %1652 = vmatprep.subr.mxu0 0.0
      %1653 = vmatpush1.msra.mxu0 %v1515
      %1654 = vmatprep.subr.mxu0 0.0
      %1655 = vmatpush1.msra.mxu0 0.0
      %1656 = vmatprep.subr.mxu0 0.0
      %1657 = vmatpush1.msra.mxu0 0.0
      %1658 = vmatprep.subr.mxu0 0.0
      %1659 = vmatpush1.msra.mxu0 0.0
      %1660 = vmatprep.subr.mxu0 0.0
      %1661 = vmatpush1.msra.mxu0 0.0
      %1662 = vmatprep.subr.mxu0 0.0
      %1663 = vmatpush1.msra.mxu0 0.0
      %1664 = vmatprep.subr.mxu0 0.0
      %1665 = vmatpush1.msra.mxu0 0.0
      %1666 = vmatprep.subr.mxu0 0.0
      %1667 = vmatpush1.msra.mxu0 0.0
      %1668 = vmatprep.subr.mxu0 0.0
      %1669 = vmatpush1.msra.mxu0 0.0
      %1670 = vmatprep.subr.mxu0 0.0
      %1671 = vmatpush1.msra.mxu0 0.0
      %1672 = vmatprep.subr.mxu0 0.0
      %1673 = vmatpush1.msra.mxu0 0.0
      %1674 = vmatprep.subr.mxu0 0.0
      %1675 = vmatpush1.msra.mxu0 0.0
      %1676 = vmatprep.subr.mxu0 0.0
      %1677 = vmatpush1.msra.mxu0 0.0
      %1678 = vmatprep.subr.mxu0 0.0
      %1679 = vmatpush1.msra.mxu0 0.0
      %1680 = vmatprep.subr.mxu0 0.0
      %1681 = vmatpush1.msra.mxu0 0.0
      %1682 = vmatprep.subr.mxu0 0.0
      %1683 = vmatpush1.msra.mxu0 0.0
      %1684 = vmatprep.subr.mxu0 0.0
      %1685 = vmatpush1.msra.mxu0 0.0
      %1686 = vmatprep.mubr.f32.mxu0 0.0
      %1687 = vmatmul.mubr.f32.gmra.mrb[0].mxu0 %v1496
      %v1688 = vpop.f32.mrb[0].mxu0
      %v1689 = vadd.f32 %v1604, %v1688
      %v1690 = vpop.f32.mrb[0].mxu0
      %1691 = vmatprep.mubr.f32.mxu0 0.0
      %1692 = vmatmul.mubr.f32.gmra.mrb[0].mxu0 %v1497
      %v1693 = vpop.f32.mrb[0].mxu0
      %v1694 = vadd.f32 %v1609, %v1693
      %v1695 = vpop.f32.mrb[0].mxu0
      %1696 = vmatprep.mubr.f32.mxu0 0.0
      %1697 = vmatmul.mubr.f32.gmra.mrb[0].mxu0 %v1498
      %v1698 = vpop.f32.mrb[0].mxu0
      %v1699 = vadd.f32 %v1614, %v1698
      %v1700 = vpop.f32.mrb[0].mxu0
      %1701 = vmatprep.mubr.f32.mxu0 0.0
      %1702 = vmatmul.mubr.f32.gmra.mrb[0].mxu0 %v1499
      %v1703 = vpop.f32.mrb[0].mxu0
      %v1704 = vadd.f32 %v1619, %v1703
      %v1705 = vpop.f32.mrb[0].mxu0
      %1706 = vdwg.mxu0
      %v1707 = vld [vmem:[#allocation3 + $0x2] sm:$0xff]
      %v1708 = vld [vmem:[#allocation3 + $0xa] sm:$0xff]
      %v1709 = vld [vmem:[#allocation3 + $0x12] sm:$0xff]
      %v1710 = vld [vmem:[#allocation3 + $0x1a] sm:$0xff]
      %s1711 = scalar_lea.vmem %s13, 256
      %v1712 = vld [vmem:[%s1711] sm:$0xff]
      %v1713 = vld [vmem:[%s1711 + $0x8] sm:$0xff]
      %v1714 = vld [vmem:[%s1711 + $0x10] sm:$0xff]
      %v1715 = vld [vmem:[%s1711 + $0x18] sm:$0xff]
      %v1716 = vld [vmem:[%s1711 + $0x20] sm:$0xff]
      %v1717 = vld [vmem:[%s1711 + $0x28] sm:$0xff]
      %v1718 = vld [vmem:[%s1711 + $0x30] sm:$0xff]
      %v1719 = vld [vmem:[%s1711 + $0x38] sm:$0xff]
      %v1720 = vld [vmem:[%s1711 + $0x40] sm:$0xff]
      %v1721 = vld [vmem:[%s1711 + $0x48] sm:$0xff]
      %v1722 = vld [vmem:[%s1711 + $0x50] sm:$0xff]
      %v1723 = vld [vmem:[%s1711 + $0x58] sm:$0xff]
      %v1724 = vld [vmem:[%s1711 + $0x60] sm:$0xff]
      %v1725 = vld [vmem:[%s1711 + $0x68] sm:$0xff]
      %v1726 = vld [vmem:[%s1711 + $0x70] sm:$0xff]
      %v1727 = vld [vmem:[%s1711 + $0x78] sm:$0xff]
      %1728 = vmatprep.subr.mxu0 0.0
      %1729 = vmatpush1.msra.mxu0 %v1712
      %1730 = vmatprep.subr.mxu0 0.0
      %1731 = vmatpush1.msra.mxu0 %v1713
      %1732 = vmatprep.subr.mxu0 0.0
      %1733 = vmatpush1.msra.mxu0 %v1714
      %1734 = vmatprep.subr.mxu0 0.0
      %1735 = vmatpush1.msra.mxu0 %v1715
      %1736 = vmatprep.subr.mxu0 0.0
      %1737 = vmatpush1.msra.mxu0 %v1716
      %1738 = vmatprep.subr.mxu0 0.0
      %1739 = vmatpush1.msra.mxu0 %v1717
      %1740 = vmatprep.subr.mxu0 0.0
      %1741 = vmatpush1.msra.mxu0 %v1718
      %1742 = vmatprep.subr.mxu0 0.0
      %1743 = vmatpush1.msra.mxu0 %v1719
      %1744 = vmatprep.subr.mxu0 0.0
      %1745 = vmatpush1.msra.mxu0 %v1720
      %1746 = vmatprep.subr.mxu0 0.0
      %1747 = vmatpush1.msra.mxu0 %v1721
      %1748 = vmatprep.subr.mxu0 0.0
      %1749 = vmatpush1.msra.mxu0 %v1722
      %1750 = vmatprep.subr.mxu0 0.0
      %1751 = vmatpush1.msra.mxu0 %v1723
      %1752 = vmatprep.subr.mxu0 0.0
      %1753 = vmatpush1.msra.mxu0 %v1724
      %1754 = vmatprep.subr.mxu0 0.0
      %1755 = vmatpush1.msra.mxu0 %v1725
      %1756 = vmatprep.subr.mxu0 0.0
      %1757 = vmatpush1.msra.mxu0 %v1726
      %1758 = vmatprep.subr.mxu0 0.0
      %1759 = vmatpush1.msra.mxu0 %v1727
      %1760 = vmatprep.subr.mxu0 0.0
      %1761 = vmatpush1.msra.mxu0 0.0
      %1762 = vmatprep.subr.mxu0 0.0
      %1763 = vmatpush1.msra.mxu0 0.0
      %1764 = vmatprep.subr.mxu0 0.0
      %1765 = vmatpush1.msra.mxu0 0.0
      %1766 = vmatprep.subr.mxu0 0.0
      %1767 = vmatpush1.msra.mxu0 0.0
      %1768 = vmatprep.subr.mxu0 0.0
      %1769 = vmatpush1.msra.mxu0 0.0
      %1770 = vmatprep.subr.mxu0 0.0
      %1771 = vmatpush1.msra.mxu0 0.0
      %1772 = vmatprep.subr.mxu0 0.0
      %1773 = vmatpush1.msra.mxu0 0.0
      %1774 = vmatprep.subr.mxu0 0.0
      %1775 = vmatpush1.msra.mxu0 0.0
      %1776 = vmatprep.subr.mxu0 0.0
      %1777 = vmatpush1.msra.mxu0 0.0
      %1778 = vmatprep.subr.mxu0 0.0
      %1779 = vmatpush1.msra.mxu0 0.0
      %1780 = vmatprep.subr.mxu0 0.0
      %1781 = vmatpush1.msra.mxu0 0.0
      %1782 = vmatprep.subr.mxu0 0.0
      %1783 = vmatpush1.msra.mxu0 0.0
      %1784 = vmatprep.subr.mxu0 0.0
      %1785 = vmatpush1.msra.mxu0 0.0
      %1786 = vmatprep.subr.mxu0 0.0
      %1787 = vmatpush1.msra.mxu0 0.0
      %1788 = vmatprep.subr.mxu0 0.0
      %1789 = vmatpush1.msra.mxu0 0.0
      %1790 = vmatprep.subr.mxu0 0.0
      %1791 = vmatpush1.msra.mxu0 0.0
      %1792 = vmatprep.mubr.f32.mxu0 0.0
      %1793 = vmatmul.mubr.f32.gmra.mrb[0].mxu0 %v1707
      %v1794 = vpop.f32.mrb[0].mxu0
      %v1795 = vadd.f32 0.0, %v1794
      %v1796 = vpop.f32.mrb[0].mxu0
      %1797 = vmatprep.mubr.f32.mxu0 0.0
      %1798 = vmatmul.mubr.f32.gmra.mrb[0].mxu0 %v1708
      %v1799 = vpop.f32.mrb[0].mxu0
      %v1800 = vadd.f32 0.0, %v1799
      %v1801 = vpop.f32.mrb[0].mxu0
      %1802 = vmatprep.mubr.f32.mxu0 0.0
      %1803 = vmatmul.mubr.f32.gmra.mrb[0].mxu0 %v1709
      %v1804 = vpop.f32.mrb[0].mxu0
      %v1805 = vadd.f32 0.0, %v1804
      %v1806 = vpop.f32.mrb[0].mxu0
      %1807 = vmatprep.mubr.f32.mxu0 0.0
      %1808 = vmatmul.mubr.f32.gmra.mrb[0].mxu0 %v1710
      %v1809 = vpop.f32.mrb[0].mxu0
      %v1810 = vadd.f32 0.0, %v1809
      %v1811 = vpop.f32.mrb[0].mxu0
      %1812 = vdwg.mxu0
      %v1813 = vadd.f32 %v1689, %v1795
      %v1814 = vadd.f32 %v1694, %v1800
      %v1815 = vadd.f32 %v1699, %v1805
      %v1816 = vadd.f32 %v1704, %v1810
      %v1817 = vld [vmem:[#allocation3 + $0x3] sm:$0xff]
      %v1818 = vld [vmem:[#allocation3 + $0xb] sm:$0xff]
      %v1819 = vld [vmem:[#allocation3 + $0x13] sm:$0xff]
      %v1820 = vld [vmem:[#allocation3 + $0x1b] sm:$0xff]
      %s1821 = scalar_lea.vmem %s13, 384
      %v1822 = vld [vmem:[%s1821] sm:$0xff]
      %v1823 = vld [vmem:[%s1821 + $0x8] sm:$0xff]
      %v1824 = vld [vmem:[%s1821 + $0x10] sm:$0xff]
      %v1825 = vld [vmem:[%s1821 + $0x18] sm:$0xff]
      %v1826 = vld [vmem:[%s1821 + $0x20] sm:$0xff]
      %v1827 = vld [vmem:[%s1821 + $0x28] sm:$0xff]
      %v1828 = vld [vmem:[%s1821 + $0x30] sm:$0xff]
      %v1829 = vld [vmem:[%s1821 + $0x38] sm:$0xff]
      %v1830 = vld [vmem:[%s1821 + $0x40] sm:$0xff]
      %v1831 = vld [vmem:[%s1821 + $0x48] sm:$0xff]
      %v1832 = vld [vmem:[%s1821 + $0x50] sm:$0xff]
      %v1833 = vld [vmem:[%s1821 + $0x58] sm:$0xff]
      %v1834 = vld [vmem:[%s1821 + $0x60] sm:$0xff]
      %v1835 = vld [vmem:[%s1821 + $0x68] sm:$0xff]
      %v1836 = vld [vmem:[%s1821 + $0x70] sm:$0xff]
      %v1837 = vld [vmem:[%s1821 + $0x78] sm:$0xff]
      %1838 = vmatprep.subr.mxu0 0.0
      %1839 = vmatpush1.msra.mxu0 %v1822
      %1840 = vmatprep.subr.mxu0 0.0
      %1841 = vmatpush1.msra.mxu0 %v1823
      %1842 = vmatprep.subr.mxu0 0.0
      %1843 = vmatpush1.msra.mxu0 %v1824
      %1844 = vmatprep.subr.mxu0 0.0
      %1845 = vmatpush1.msra.mxu0 %v1825
      %1846 = vmatprep.subr.mxu0 0.0
      %1847 = vmatpush1.msra.mxu0 %v1826
      %1848 = vmatprep.subr.mxu0 0.0
      %1849 = vmatpush1.msra.mxu0 %v1827
      %1850 = vmatprep.subr.mxu0 0.0
      %1851 = vmatpush1.msra.mxu0 %v1828
      %1852 = vmatprep.subr.mxu0 0.0
      %1853 = vmatpush1.msra.mxu0 %v1829
      %1854 = vmatprep.subr.mxu0 0.0
      %1855 = vmatpush1.msra.mxu0 %v1830
      %1856 = vmatprep.subr.mxu0 0.0
      %1857 = vmatpush1.msra.mxu0 %v1831
      %1858 = vmatprep.subr.mxu0 0.0
      %1859 = vmatpush1.msra.mxu0 %v1832
      %1860 = vmatprep.subr.mxu0 0.0
      %1861 = vmatpush1.msra.mxu0 %v1833
      %1862 = vmatprep.subr.mxu0 0.0
      %1863 = vmatpush1.msra.mxu0 %v1834
      %1864 = vmatprep.subr.mxu0 0.0
      %1865 = vmatpush1.msra.mxu0 %v1835
      %1866 = vmatprep.subr.mxu0 0.0
      %1867 = vmatpush1.msra.mxu0 %v1836
      %1868 = vmatprep.subr.mxu0 0.0
      %1869 = vmatpush1.msra.mxu0 %v1837
      %1870 = vmatprep.subr.mxu0 0.0
      %1871 = vmatpush1.msra.mxu0 0.0
      %1872 = vmatprep.subr.mxu0 0.0
      %1873 = vmatpush1.msra.mxu0 0.0
      %1874 = vmatprep.subr.mxu0 0.0
      %1875 = vmatpush1.msra.mxu0 0.0
      %1876 = vmatprep.subr.mxu0 0.0
      %1877 = vmatpush1.msra.mxu0 0.0
      %1878 = vmatprep.subr.mxu0 0.0
      %1879 = vmatpush1.msra.mxu0 0.0
      %1880 = vmatprep.subr.mxu0 0.0
      %1881 = vmatpush1.msra.mxu0 0.0
      %1882 = vmatprep.subr.mxu0 0.0
      %1883 = vmatpush1.msra.mxu0 0.0
      %1884 = vmatprep.subr.mxu0 0.0
      %1885 = vmatpush1.msra.mxu0 0.0
      %1886 = vmatprep.subr.mxu0 0.0
      %1887 = vmatpush1.msra.mxu0 0.0
      %1888 = vmatprep.subr.mxu0 0.0
      %1889 = vmatpush1.msra.mxu0 0.0
      %1890 = vmatprep.subr.mxu0 0.0
      %1891 = vmatpush1.msra.mxu0 0.0
      %1892 = vmatprep.subr.mxu0 0.0
      %1893 = vmatpush1.msra.mxu0 0.0
      %1894 = vmatprep.subr.mxu0 0.0
      %1895 = vmatpush1.msra.mxu0 0.0
      %1896 = vmatprep.subr.mxu0 0.0
      %1897 = vmatpush1.msra.mxu0 0.0
      %1898 = vmatprep.subr.mxu0 0.0
      %1899 = vmatpush1.msra.mxu0 0.0
      %1900 = vmatprep.subr.mxu0 0.0
      %1901 = vmatpush1.msra.mxu0 0.0
      %1902 = vmatprep.mubr.f32.mxu0 0.0
      %1903 = vmatmul.mubr.f32.gmra.mrb[0].mxu0 %v1817
      %v1904 = vpop.f32.mrb[0].mxu0
      %v1905 = vadd.f32 0.0, %v1904
      %v1906 = vpop.f32.mrb[0].mxu0
      %1907 = vmatprep.mubr.f32.mxu0 0.0
      %1908 = vmatmul.mubr.f32.gmra.mrb[0].mxu0 %v1818
      %v1909 = vpop.f32.mrb[0].mxu0
      %v1910 = vadd.f32 0.0, %v1909
      %v1911 = vpop.f32.mrb[0].mxu0
      %1912 = vmatprep.mubr.f32.mxu0 0.0
      %1913 = vmatmul.mubr.f32.gmra.mrb[0].mxu0 %v1819
      %v1914 = vpop.f32.mrb[0].mxu0
      %v1915 = vadd.f32 0.0, %v1914
      %v1916 = vpop.f32.mrb[0].mxu0
      %1917 = vmatprep.mubr.f32.mxu0 0.0
      %1918 = vmatmul.mubr.f32.gmra.mrb[0].mxu0 %v1820
      %v1919 = vpop.f32.mrb[0].mxu0
      %v1920 = vadd.f32 0.0, %v1919
      %v1921 = vpop.f32.mrb[0].mxu0
      %1922 = vdwg.mxu0
      %v1923 = vadd.f32 %v1813, %v1905
      %v1924 = vadd.f32 %v1814, %v1910
      %v1925 = vadd.f32 %v1815, %v1915
      %v1926 = vadd.f32 %v1816, %v1920
      %v1927 = vld [vmem:[#allocation3 + $0x4] sm:$0xff]
      %v1928 = vld [vmem:[#allocation3 + $0xc] sm:$0xff]
      %v1929 = vld [vmem:[#allocation3 + $0x14] sm:$0xff]
      %v1930 = vld [vmem:[#allocation3 + $0x1c] sm:$0xff]
      %s1931 = scalar_lea.vmem %s13, 512
      %v1932 = vld [vmem:[%s1931] sm:$0xff]
      %v1933 = vld [vmem:[%s1931 + $0x8] sm:$0xff]
      %v1934 = vld [vmem:[%s1931 + $0x10] sm:$0xff]
      %v1935 = vld [vmem:[%s1931 + $0x18] sm:$0xff]
      %v1936 = vld [vmem:[%s1931 + $0x20] sm:$0xff]
      %v1937 = vld [vmem:[%s1931 + $0x28] sm:$0xff]
      %v1938 = vld [vmem:[%s1931 + $0x30] sm:$0xff]
      %v1939 = vld [vmem:[%s1931 + $0x38] sm:$0xff]
      %v1940 = vld [vmem:[%s1931 + $0x40] sm:$0xff]
      %v1941 = vld [vmem:[%s1931 + $0x48] sm:$0xff]
      %v1942 = vld [vmem:[%s1931 + $0x50] sm:$0xff]
      %v1943 = vld [vmem:[%s1931 + $0x58] sm:$0xff]
      %v1944 = vld [vmem:[%s1931 + $0x60] sm:$0xff]
      %v1945 = vld [vmem:[%s1931 + $0x68] sm:$0xff]
      %v1946 = vld [vmem:[%s1931 + $0x70] sm:$0xff]
      %v1947 = vld [vmem:[%s1931 + $0x78] sm:$0xff]
      %1948 = vmatprep.subr.mxu0 0.0
      %1949 = vmatpush1.msra.mxu0 %v1932
      %1950 = vmatprep.subr.mxu0 0.0
      %1951 = vmatpush1.msra.mxu0 %v1933
      %1952 = vmatprep.subr.mxu0 0.0
      %1953 = vmatpush1.msra.mxu0 %v1934
      %1954 = vmatprep.subr.mxu0 0.0
      %1955 = vmatpush1.msra.mxu0 %v1935
      %1956 = vmatprep.subr.mxu0 0.0
      %1957 = vmatpush1.msra.mxu0 %v1936
      %1958 = vmatprep.subr.mxu0 0.0
      %1959 = vmatpush1.msra.mxu0 %v1937
      %1960 = vmatprep.subr.mxu0 0.0
      %1961 = vmatpush1.msra.mxu0 %v1938
      %1962 = vmatprep.subr.mxu0 0.0
      %1963 = vmatpush1.msra.mxu0 %v1939
      %1964 = vmatprep.subr.mxu0 0.0
      %1965 = vmatpush1.msra.mxu0 %v1940
      %1966 = vmatprep.subr.mxu0 0.0
      %1967 = vmatpush1.msra.mxu0 %v1941
      %1968 = vmatprep.subr.mxu0 0.0
      %1969 = vmatpush1.msra.mxu0 %v1942
      %1970 = vmatprep.subr.mxu0 0.0
      %1971 = vmatpush1.msra.mxu0 %v1943
      %1972 = vmatprep.subr.mxu0 0.0
      %1973 = vmatpush1.msra.mxu0 %v1944
      %1974 = vmatprep.subr.mxu0 0.0
      %1975 = vmatpush1.msra.mxu0 %v1945
      %1976 = vmatprep.subr.mxu0 0.0
      %1977 = vmatpush1.msra.mxu0 %v1946
      %1978 = vmatprep.subr.mxu0 0.0
      %1979 = vmatpush1.msra.mxu0 %v1947
      %1980 = vmatprep.subr.mxu0 0.0
      %1981 = vmatpush1.msra.mxu0 0.0
      %1982 = vmatprep.subr.mxu0 0.0
      %1983 = vmatpush1.msra.mxu0 0.0
      %1984 = vmatprep.subr.mxu0 0.0
      %1985 = vmatpush1.msra.mxu0 0.0
      %1986 = vmatprep.subr.mxu0 0.0
      %1987 = vmatpush1.msra.mxu0 0.0
      %1988 = vmatprep.subr.mxu0 0.0
      %1989 = vmatpush1.msra.mxu0 0.0
      %1990 = vmatprep.subr.mxu0 0.0
      %1991 = vmatpush1.msra.mxu0 0.0
      %1992 = vmatprep.subr.mxu0 0.0
      %1993 = vmatpush1.msra.mxu0 0.0
      %1994 = vmatprep.subr.mxu0 0.0
      %1995 = vmatpush1.msra.mxu0 0.0
      %1996 = vmatprep.subr.mxu0 0.0
      %1997 = vmatpush1.msra.mxu0 0.0
      %1998 = vmatprep.subr.mxu0 0.0
      %1999 = vmatpush1.msra.mxu0 0.0
      %2000 = vmatprep.subr.mxu0 0.0
      %2001 = vmatpush1.msra.mxu0 0.0
      %2002 = vmatprep.subr.mxu0 0.0
      %2003 = vmatpush1.msra.mxu0 0.0
      %2004 = vmatprep.subr.mxu0 0.0
      %2005 = vmatpush1.msra.mxu0 0.0
      %2006 = vmatprep.subr.mxu0 0.0
      %2007 = vmatpush1.msra.mxu0 0.0
      %2008 = vmatprep.subr.mxu0 0.0
      %2009 = vmatpush1.msra.mxu0 0.0
      %2010 = vmatprep.subr.mxu0 0.0
      %2011 = vmatpush1.msra.mxu0 0.0
      %2012 = vmatprep.mubr.f32.mxu0 0.0
      %2013 = vmatmul.mubr.f32.gmra.mrb[0].mxu0 %v1927
      %v2014 = vpop.f32.mrb[0].mxu0
      %v2015 = vadd.f32 0.0, %v2014
      %v2016 = vpop.f32.mrb[0].mxu0
      %2017 = vmatprep.mubr.f32.mxu0 0.0
      %2018 = vmatmul.mubr.f32.gmra.mrb[0].mxu0 %v1928
      %v2019 = vpop.f32.mrb[0].mxu0
      %v2020 = vadd.f32 0.0, %v2019
      %v2021 = vpop.f32.mrb[0].mxu0
      %2022 = vmatprep.mubr.f32.mxu0 0.0
      %2023 = vmatmul.mubr.f32.gmra.mrb[0].mxu0 %v1929
      %v2024 = vpop.f32.mrb[0].mxu0
      %v2025 = vadd.f32 0.0, %v2024
      %v2026 = vpop.f32.mrb[0].mxu0
      %2027 = vmatprep.mubr.f32.mxu0 0.0
      %2028 = vmatmul.mubr.f32.gmra.mrb[0].mxu0 %v1930
      %v2029 = vpop.f32.mrb[0].mxu0
      %v2030 = vadd.f32 0.0, %v2029
      %v2031 = vpop.f32.mrb[0].mxu0
      %2032 = vdwg.mxu0
      %v2033 = vadd.f32 %v1923, %v2015
      %v2034 = vadd.f32 %v1924, %v2020
      %v2035 = vadd.f32 %v1925, %v2025
      %v2036 = vadd.f32 %v1926, %v2030
      %v2037 = vld [vmem:[%s14] sm:$0x1]
      %v2039 = vlaneseq
      %v2040 = vshrl.u32 %v2039, 7
      %v2041 = vsub.s32 0, %v2040
      %v2042 = vrot.slane %v2037, %v2041
      %v2044 = vmul.f32 %v2033, %v2042
      %v2045 = vmul.f32 %v2034, %v2042
      %v2046 = vmul.f32 %v2035, %v2042
      %v2047 = vmul.f32 %v2036, %v2042
      %v2048 = vld [vmem:[%s15] sm:$0x1]
      %v2050 = vlaneseq
      %v2051 = vshrl.u32 %v2050, 7
      %v2052 = vsub.s32 0, %v2051
      %v2053 = vrot.slane %v2048, %v2052
      %v2055 = vadd.f32 %v2044, %v2053
      %v2056 = vadd.f32 %v2045, %v2053
      %v2057 = vadd.f32 %v2046, %v2053
      %v2058 = vadd.f32 %v2047, %v2053
      %v2059 = vtanh.pop %v2055
      %v2060 = vtanh.pop %v2056
      %v2061 = vtanh.pop %v2057
      %v2062 = vtanh.pop %v2058
      %vm2063 = vcmask 785408
      %2064 = vst.msk [vmem:[%s569] sm:$0xff] %vm2063, %v2059
      %2065 = vst.msk [vmem:[%s569 + $0x8] sm:$0xff] %vm2063, %v2060
      %2066 = vst.msk [vmem:[%s569 + $0x10] sm:$0xff] %vm2063, %v2061
      %2067 = vst.msk [vmem:[%s569 + $0x18] sm:$0xff] %vm2063, %v2062
      %p2068 = scmp.lt.s32.totalorder %s27, 1
      %s2069 = scalar_select %p2068, %s27, 1
      %s2070 = smul.addr %s2069, 4
      %s2071 = smul.addr %s2070, 8
      %s2072 = scalar_lea.vmem %s16, %s2071
      // Predicated region
      $region85: #{generator_forward.1} parent=83 // pred_check
        %p2073 = pneg %p401
      $region86: #{generator_forward.1} parent=83 // pred_check_branch
        %2075 = sbr.rel (%p2073) target = $region88
      $region87: #{generator_forward.1} parent=83 // pred_region
        _
      $region88: #{generator_forward.1} parent=83 // pred_fallthru
        _
    $region84: #{generator_forward.1} parent=5 // pred_fallthru
      _
    %p2076 = scmp.le.s32.totalorder 2, %s22
    // Predicated region
    $region89: #{generator_forward.1} parent=5 // pred_check
      %p2077 = pneg %p2076
    $region90: #{generator_forward.1} parent=5 // pred_check_branch
      %2079 = sbr.rel (%p2077) target = $region92
    $region91: #{generator_forward.1} parent=5 // pred_region
      %s2080 = ssub.s32 %s22, 2
      // Predicated region
      $region93: #{generator_forward.1} parent=91 // pred_check
        %p2081 = pneg %p407
      $region94: #{generator_forward.1} parent=91 // pred_check_branch
        %2083 = sbr.rel (%p2081) target = $region96
      $region95: #{generator_forward.1} parent=91 // pred_region
        %p2084 = scmp.lt.s32.totalorder %s28, 1
        %s2085 = scalar_select %p2084, %s28, 1
        %s2086 = smul.addr %s2085, 4
        %s2087 = smul.addr %s2086, 8
        %s2088 = scalar_lea.vmem %s16, %s2087
      $region96: #{generator_forward.1} parent=91 // pred_fallthru
        _
    $region92: #{generator_forward.1} parent=5 // pred_fallthru
      _
  $region6: #{generator_forward.1} parent=0 // loop_footer
    %s26 = sadd.s32 1, %s22
  $region7: #{generator_forward.1} parent=0 // loop_footer_branch
    %21 = sbr.rel target = $region3
  $region8: #{generator_forward.1} parent=0 // loop_exit
    _

</llo_original>
